<compile_context>
chip_gen: v6e
topology: v6e:2x2x1
jax: 0.10.0
libtpu: 0.0.40
codegen_flags: <defaults>
</compile_context>

<pallas_src>
import functools
import math

import jax
import jax.numpy as jnp
from jax.experimental import pallas as pl
from jax.experimental.pallas import tpu as pltpu

# ---- small, deterministic test configuration (scaled-down module dims) ----
BATCH = 2              # batch size
SEQ_LEN = 8            # sequence length == number of graph nodes per sample
VOCAB = 64             # surrogate BioBERT vocab
D_BERT = 96            # surrogate BioBERT hidden size   (768 in the original)
LSTM_H = 32            # LSTM hidden per direction       (256 in the original)
D_TEXT = 2 * LSTM_H    # BiLSTM output = attention embed (512 in the original)
GCN_H = 32             # DualGraphNN hidden_dim          (128 in the original)
GCN_OUT = 48           # DualGraphNN output_dim          (256 in the original)
N_HEADS = 8            # MultiheadAttention heads
MLP_OUT = 32           # final MLP output                (256 in the original)

INTERACTION_EDGE_INDEX = ((0, 1, 2), (1, 2, 0))
SIMILARITY_EDGE_INDEX = ((0, 1), (1, 2))


def _round_up(x, m):
    return ((x + m - 1) // m) * m


# ============================================================================
# Kernel 1: tiled matmul + bias + optional ReLU (used by every dense layer)
# ============================================================================
def _linear_kernel(x_ref, w_ref, b_ref, o_ref, acc_ref, *, activation):
    @pl.when(pl.program_id(2) == 0)
    def _():
        acc_ref[...] = jnp.zeros_like(acc_ref)

    acc_ref[...] += jnp.dot(
        x_ref[...].astype(jnp.float32),
        w_ref[...].astype(jnp.float32),
        preferred_element_type=jnp.float32,
    )

    @pl.when(pl.program_id(2) == pl.num_programs(2) - 1)
    def _():
        out = acc_ref[...] + b_ref[...].astype(jnp.float32)
        if activation == "relu":
            out = jnp.maximum(out, 0.0)
        o_ref[...] = out.astype(o_ref.dtype)


def linear(x, w, b=None, activation=None):
    """y = act(x @ w + b); x: (M, K), w: (K, N), b: (N,) or None."""
    M, K = x.shape
    Kw, N = w.shape
    assert K == Kw
    if b is None:
        b = jnp.zeros((N,), w.dtype)

    tm = min(128, _round_up(M, 8))
    tn = min(256, _round_up(N, 128))
    tk = min(512, _round_up(K, 128))
    Mp, Np, Kp = _round_up(M, tm), _round_up(N, tn), _round_up(K, tk)

    xp = jnp.pad(x, ((0, Mp - M), (0, Kp - K)))
    wp = jnp.pad(w, ((0, Kp - K), (0, Np - N)))
    bp = jnp.pad(b, (0, Np - N)).reshape(1, Np)

    grid = (Mp // tm, Np // tn, Kp // tk)
    out = pl.pallas_call(
        functools.partial(_linear_kernel, activation=activation),
        out_shape=jax.ShapeDtypeStruct((Mp, Np), x.dtype),
        grid_spec=pltpu.PrefetchScalarGridSpec(
            num_scalar_prefetch=0,
            grid=grid,
            in_specs=[
                pl.BlockSpec((tm, tk), lambda i, j, k: (i, k)),
                pl.BlockSpec((tk, tn), lambda i, j, k: (k, j)),
                pl.BlockSpec((1, tn), lambda i, j, k: (0, j)),
            ],
            out_specs=pl.BlockSpec((tm, tn), lambda i, j, k: (i, j)),
            scratch_shapes=[pltpu.VMEM((tm, tn), jnp.float32)],
        ),
        compiler_params=pltpu.CompilerParams(
            dimension_semantics=("parallel", "parallel", "arbitrary")),
        cost_estimate=pl.CostEstimate(
            flops=2 * Mp * Np * Kp,
            transcendentals=0,
            bytes_accessed=(Mp * Kp + Kp * Np + Mp * Np) * x.dtype.itemsize),
    )(xp, wp, bp)
    return out[:M, :N]


# ============================================================================
# Kernel 2: sequential LSTM recurrence (time-major); gate order (i, f, g, o)
# ============================================================================
def _lstm_scan_kernel(xg_ref, whh_ref, out_ref):
    seq_len, bsz, _ = xg_ref.shape
    hid = whh_ref.shape[0]
    whh = whh_ref[...].astype(jnp.float32)

    def step(t, carry):
        h, c = carry
        xg = xg_ref[pl.ds(t, 1), :, :][0].astype(jnp.float32)          # (B, 4H)
        g = xg + jnp.dot(h, whh, preferred_element_type=jnp.float32)    # (B, 4H)
        i_g = jax.nn.sigmoid(g[:, 0:hid])
        f_g = jax.nn.sigmoid(g[:, hid:2 * hid])
        g_g = jnp.tanh(g[:, 2 * hid:3 * hid])
        o_g = jax.nn.sigmoid(g[:, 3 * hid:4 * hid])
        c = f_g * c + i_g * g_g
        h = o_g * jnp.tanh(c)
        out_ref[pl.ds(t, 1), :, :] = h[None, :, :].astype(out_ref.dtype)
        return (h, c)

    h0 = jnp.zeros((bsz, hid), jnp.float32)
    c0 = jnp.zeros((bsz, hid), jnp.float32)
    jax.lax.fori_loop(0, seq_len, step, (h0, c0))


def lstm_recurrence(xg_time_major, w_hh):
    """xg: (S, B, 4H) precomputed input gates (x@W_ih + biases); w_hh: (H, 4H)."""
    S, B, _ = xg_time_major.shape
    H = w_hh.shape[0]
    return pl.pallas_call(
        _lstm_scan_kernel,
        out_shape=jax.ShapeDtypeStruct((S, B, H), xg_time_major.dtype),
        in_specs=[pl.BlockSpec(memory_space=pltpu.MemorySpace.VMEM)] * 2,
        out_specs=pl.BlockSpec(memory_space=pltpu.MemorySpace.VMEM),
    )(xg_time_major, w_hh)


# ============================================================================
# Kernel 3: GCN propagation  out[b] = relu(A_hat @ x[b] + bias), grid over batch
# ============================================================================
def _gcn_prop_kernel(adj_ref, x_ref, b_ref, o_ref, *, relu):
    out = jnp.dot(adj_ref[...].astype(jnp.float32),
                  x_ref[...].astype(jnp.float32),
                  preferred_element_type=jnp.float32)
    out = out + b_ref[...].astype(jnp.float32)
    if relu:
        out = jnp.maximum(out, 0.0)
    o_ref[...] = out.astype(o_ref.dtype)


def gcn_propagate(adj, x, b, relu=True):
    """adj: (S, S) dense normalized adjacency; x: (B, S, H); b: (H,)."""
    B, S, H = x.shape
    return pl.pallas_call(
        functools.partial(_gcn_prop_kernel, relu=relu),
        out_shape=jax.ShapeDtypeStruct((B, S, H), x.dtype),
        grid_spec=pltpu.PrefetchScalarGridSpec(
            num_scalar_prefetch=0,
            grid=(B,),
            in_specs=[
                pl.BlockSpec((S, S), lambda bi: (0, 0)),
                pl.BlockSpec((pl.Squeezed(), S, H), lambda bi: (bi, 0, 0)),
                pl.BlockSpec((1, H), lambda bi: (0, 0)),
            ],
            out_specs=pl.BlockSpec((pl.Squeezed(), S, H), lambda bi: (bi, 0, 0)),
        ),
        compiler_params=pltpu.CompilerParams(dimension_semantics=("parallel",)),
    )(adj, x, b.reshape(1, H))


# ============================================================================
# Kernel 4: single-head scaled-dot-product attention, grid over (token, head)
# ============================================================================
def _attn_kernel(q_ref, k_ref, v_ref, o_ref, *, scale):
    q = q_ref[...].astype(jnp.float32) * scale
    k = k_ref[...].astype(jnp.float32)
    v = v_ref[...].astype(jnp.float32)
    s = jax.lax.dot_general(q, k, (((1,), (1,)), ((), ())),
                            preferred_element_type=jnp.float32)        # (L, L)
    m = jnp.max(s, axis=-1, keepdims=True)
    p = jnp.exp(s - m)
    denom = jnp.sum(p, axis=-1, keepdims=True)
    p = p * pl.reciprocal(denom, approx=True)
    o = jnp.dot(p, v, preferred_element_type=jnp.float32)
    o_ref[...] = o.astype(o_ref.dtype)


def attention_core(q, k, v, scale):
    """q/k/v: (NB, L, Dh) -> softmax(q k^T * scale) v per leading slice."""
    NB, L, Dh = q.shape
    spec = pl.BlockSpec((pl.Squeezed(), L, Dh), lambda i: (i, 0, 0))
    return pl.pallas_call(
        functools.partial(_attn_kernel, scale=scale),
        out_shape=jax.ShapeDtypeStruct((NB, L, Dh), q.dtype),
        grid_spec=pltpu.PrefetchScalarGridSpec(
            num_scalar_prefetch=0,
            grid=(NB,),
            in_specs=[spec, spec, spec],
            out_specs=spec,
        ),
        compiler_params=pltpu.CompilerParams(dimension_semantics=("parallel",)),
    )(q, k, v)


# ============================================================================
# Module forward (wrappers composing the kernels)
# ============================================================================
def bilstm(seq, p):
    """torch.nn.LSTM(bidirectional=True, batch_first=True) forward."""
    B, S, Din = seq.shape
    flat = seq.reshape(B * S, Din)
    xg_f = linear(flat, p["w_ih_f"], p["b_f"]).reshape(B, S, 4 * LSTM_H)
    xg_b = linear(flat, p["w_ih_b"], p["b_b"]).reshape(B, S, 4 * LSTM_H)
    xg_f = jnp.transpose(xg_f, (1, 0, 2))            # (S, B, 4H) time-major
    xg_b = jnp.transpose(xg_b, (1, 0, 2))[::-1]      # reversed time for bwd dir
    h_f = lstm_recurrence(xg_f, p["w_hh_f"])                 # (S, B, H)
    h_b = lstm_recurrence(xg_b, p["w_hh_b"])[::-1]           # back to forward time
    h_f = jnp.transpose(h_f, (1, 0, 2))
    h_b = jnp.transpose(h_b, (1, 0, 2))
    return jnp.concatenate([h_f, h_b], axis=-1)              # (B, S, 2H)


def gcn_branch(text, adj, w1, b1, w2, b2):
    """Two GCNConv layers + ReLU (one DualGraphNN branch), shared adjacency."""
    B, S, Din = text.shape
    xw1 = linear(text.reshape(B * S, Din), w1)                        # X @ W1
    h1 = gcn_propagate(adj, xw1.reshape(B, S, -1), b1, relu=True)     # relu(ÂXW1+b1)
    h1w2 = linear(h1.reshape(B * S, -1), w2)                          # H1 @ W2
    h2 = gcn_propagate(adj, h1w2.reshape(B, S, -1), b2, relu=True)
    return h2


def multihead_attention(query, key, value, p, num_heads):
    """torch.nn.MultiheadAttention forward (eval, no mask).  The original module
    feeds (B, S, E) tensors to an MHA with default batch_first=False, so dim0 is
    the sequence axis (L=B) and dim1 the batch axis (N=S); reproduced here."""
    L, N, E = query.shape
    dh = E // num_heads
    q = linear(query.reshape(L * N, E), p["wq"], p["bq"]).reshape(L, N, E)
    k = linear(key.reshape(L * N, E), p["wk"], p["bk"]).reshape(L, N, E)
    v = linear(value.reshape(L * N, E), p["wv"], p["bv"]).reshape(L, N, E)

    def to_heads(t):
        return t.reshape(L, N, num_heads, dh).transpose(1, 2, 0, 3).reshape(
            N * num_heads, L, dh)

    oh = attention_core(to_heads(q), to_heads(k), to_heads(v),
                        scale=1.0 / math.sqrt(dh))                    # (N*nh, L, dh)
    o = oh.reshape(N, num_heads, L, dh).transpose(2, 0, 1, 3).reshape(L * N, E)
    o = linear(o, p["wo"], p["bo"]).reshape(L, N, E)
    return o


def dual_graph_relation_forward(params, input_ids, attention_mask, labels, mat,
                                interaction_adj, similarity_adj):
    """DualGraphRelationModel.forward (eval mode: dropouts are identity).
    `attention_mask`, `labels`, `mat` are accepted for signature fidelity; the
    PyTorch forward returns (combined_features, None)."""
    del attention_mask, labels, mat
    B, S = input_ids.shape

    # TODO(synk): the pretrained BioBERT encoder (HF AutoModel weights) cannot be
    # reproduced in-script; its sequence output is substituted by a deterministic
    # embedding lookup over input_ids.
    seq_out = jnp.take(params["bert_embed"], input_ids, axis=0)   # (B, S, D_BERT)

    text_features = bilstm(seq_out, params["lstm"])               # (B, S, D_TEXT)

    g = params["gcn"]
    x_inter = gcn_branch(text_features, interaction_adj,
                         g["int_w1"], g["int_b1"], g["int_w2"], g["int_b2"])
    x_sim = gcn_branch(text_features, similarity_adj,
                       g["sim_w1"], g["sim_b1"], g["sim_w2"], g["sim_b2"])
    x_cat = jnp.concatenate([x_inter, x_sim], axis=-1)            # (B, S, 2*GCN_H)
    gcn_out = linear(x_cat.reshape(B * S, -1), g["fc_w"], g["fc_b"])

    gcn_features = linear(gcn_out, params["proj_w"], params["proj_b"])
    gcn_features = gcn_features.reshape(B, S, -1)                 # (B, S, D_TEXT)

    interactive = multihead_attention(gcn_features, text_features, text_features,
                                      params["attn"], N_HEADS)

    combined = gcn_features + interactive                         # (B, S, D_TEXT)
    flat = combined.reshape(B, S * combined.shape[-1])
    out = linear(flat, params["mlp_w"], params["mlp_b"])          # (B, MLP_OUT)
    return out, None


# ============================================================================
# Graph preprocessing + parameter init + driver
# ============================================================================
def gcn_norm_dense(edge_index, num_nodes):
    """Dense equivalent of torch_geometric GCNConv normalization:
    A_hat = D^-1/2 (A + I) D^-1/2 with messages flowing src -> dst."""
    src = jnp.asarray(edge_index[0], jnp.int32)
    dst = jnp.asarray(edge_index[1], jnp.int32)
    a = jnp.zeros((num_nodes, num_nodes), jnp.float32).at[dst, src].set(1.0)
    a = a + jnp.eye(num_nodes, dtype=jnp.float32)
    deg = jnp.sum(a, axis=1)
    dinv = jax.lax.rsqrt(jnp.maximum(deg, 1e-12))
    return a * dinv[:, None] * dinv[None, :]


def init_params(key):
    keys = iter(jax.random.split(key, 32))

    def w(shape, scale=0.1):
        return (scale * jax.random.normal(next(keys), shape)).astype(jnp.float32)

    return {
        "bert_embed": w((VOCAB, D_BERT), 1.0),
        "lstm": {
            "w_ih_f": w((D_BERT, 4 * LSTM_H)), "w_hh_f": w((LSTM_H, 4 * LSTM_H)),
            "b_f": w((4 * LSTM_H,)),
            "w_ih_b": w((D_BERT, 4 * LSTM_H)), "w_hh_b": w((LSTM_H, 4 * LSTM_H)),
            "b_b": w((4 * LSTM_H,)),
        },
        "gcn": {
            "int_w1": w((D_TEXT, GCN_H)), "int_b1": w((GCN_H,)),
            "int_w2": w((GCN_H, GCN_H)), "int_b2": w((GCN_H,)),
            "sim_w1": w((D_TEXT, GCN_H)), "sim_b1": w((GCN_H,)),
            "sim_w2": w((GCN_H, GCN_H)), "sim_b2": w((GCN_H,)),
            "fc_w": w((2 * GCN_H, GCN_OUT)), "fc_b": w((GCN_OUT,)),
        },
        "proj_w": w((GCN_OUT, D_TEXT)), "proj_b": w((D_TEXT,)),
        "attn": {
            "wq": w((D_TEXT, D_TEXT)), "bq": w((D_TEXT,)),
            "wk": w((D_TEXT, D_TEXT)), "bk": w((D_TEXT,)),
            "wv": w((D_TEXT, D_TEXT)), "bv": w((D_TEXT,)),
            "wo": w((D_TEXT, D_TEXT)), "bo": w((D_TEXT,)),
        },
        "mlp_w": w((SEQ_LEN * D_TEXT, MLP_OUT)), "mlp_b": w((MLP_OUT,)),
    }


if __name__ == "__main__":
    key = jax.random.PRNGKey(0)
    k_params, k_ids = jax.random.split(key)
    params = init_params(k_params)

    input_ids = jax.random.randint(k_ids, (BATCH, SEQ_LEN), 0, VOCAB, dtype=jnp.int32)
    attention_mask = jnp.ones((BATCH, SEQ_LEN), jnp.int32)   # consumed only by BERT
    labels = jnp.zeros((BATCH,), jnp.int32)                  # unused by forward
    mat = jnp.zeros((BATCH, SEQ_LEN), jnp.float32)           # unused by forward

    interaction_adj = gcn_norm_dense(INTERACTION_EDGE_INDEX, SEQ_LEN)
    similarity_adj = gcn_norm_dense(SIMILARITY_EDGE_INDEX, SEQ_LEN)

    fwd = jax.jit(dual_graph_relation_forward)
    out, aux = fwd(params, input_ids, attention_mask, labels, mat,
                   interaction_adj, similarity_adj)
    out = jax.block_until_ready(out)

    assert out.shape == (BATCH, MLP_OUT), out.shape
    assert aux is None
    assert bool(jnp.all(jnp.isfinite(out))), out
    print("KERNEL_OK")
</pallas_src>

<mosaic_0001>
module attributes {stable_mosaic.version = 11 : i64} {
  func.func @_lstm_scan_kernel(%arg0: memref<8x2x128xf32, #tpu.memory_space<vmem>>, %arg1: memref<32x128xf32, #tpu.memory_space<vmem>>, %arg2: memref<8x2x32xf32, #tpu.memory_space<vmem>>) attributes {dimension_semantics = [], scalar_prefetch = 0 : i64, scratch_operands = 0 : i64, tpu.core_type = #tpu.core_type<tc>} {
    %c0 = arith.constant 0 : index
    %c0_0 = arith.constant 0 : index
    %0 = vector.load %arg1[%c0, %c0_0] : memref<32x128xf32, #tpu.memory_space<vmem>>, vector<32x128xf32>
    %cst = arith.constant 0.000000e+00 : f32
    %1 = vector.broadcast %cst : f32 to vector<2x32xf32>
    %cst_1 = arith.constant 0.000000e+00 : f32
    %2 = vector.broadcast %cst_1 : f32 to vector<2x32xf32>
    %c0_i32 = arith.constant 0 : i32
    %c8_i32 = arith.constant 8 : i32
    %3 = arith.addi %c0_i32, %c8_i32 : i32
    %c1_i32 = arith.constant 1 : i32
    %4:2 = scf.for %arg3 = %c0_i32 to %3 step %c1_i32 iter_args(%arg4 = %1, %arg5 = %2) -> (vector<2x32xf32>, vector<2x32xf32>)  : i32 {
      %5 = arith.index_cast %arg3 : i32 to index
      %c0_3 = arith.constant 0 : index
      %c0_4 = arith.constant 0 : index
      %6 = vector.load %arg0[%5, %c0_3, %c0_4] : memref<8x2x128xf32, #tpu.memory_space<vmem>>, vector<1x2x128xf32>
      %7 = vector.shape_cast %6 : vector<1x2x128xf32> to vector<2x128xf32>
      %cst_5 = arith.constant dense<0.000000e+00> : vector<2x128xf32>
      %8 = tpu.matmul %arg4, %0, %cst_5 {dimension_numbers = #tpu.dot_dimension_numbers<[1], [0], [0], [1], [0, 0, 1, 1], [], []>} : vector<2x32xf32>, vector<32x128xf32>, vector<2x128xf32> -> vector<2x128xf32>
      %9 = arith.addf %7, %8 : vector<2x128xf32>
      %10 = vector.extract_strided_slice %9 {offsets = [0, 0], sizes = [2, 32], strides = [1, 1]} : vector<2x128xf32> to vector<2x32xf32>
      %11 = arith.negf %10 : vector<2x32xf32>
      %12 = math.exp %11 : vector<2x32xf32>
      %cst_6 = arith.constant 1.000000e+00 : f32
      %13 = vector.broadcast %cst_6 : f32 to vector<2x32xf32>
      %14 = arith.addf %13, %12 : vector<2x32xf32>
      %15 = arith.divf %13, %14 : vector<2x32xf32>
      %16 = vector.extract_strided_slice %9 {offsets = [0, 32], sizes = [2, 32], strides = [1, 1]} : vector<2x128xf32> to vector<2x32xf32>
      %17 = arith.negf %16 : vector<2x32xf32>
      %18 = math.exp %17 : vector<2x32xf32>
      %cst_7 = arith.constant 1.000000e+00 : f32
      %19 = vector.broadcast %cst_7 : f32 to vector<2x32xf32>
      %20 = arith.addf %19, %18 : vector<2x32xf32>
      %21 = arith.divf %19, %20 : vector<2x32xf32>
      %22 = vector.extract_strided_slice %9 {offsets = [0, 64], sizes = [2, 32], strides = [1, 1]} : vector<2x128xf32> to vector<2x32xf32>
      %23 = math.tanh %22 : vector<2x32xf32>
      %24 = vector.extract_strided_slice %9 {offsets = [0, 96], sizes = [2, 32], strides = [1, 1]} : vector<2x128xf32> to vector<2x32xf32>
      %25 = arith.negf %24 : vector<2x32xf32>
      %26 = math.exp %25 : vector<2x32xf32>
      %cst_8 = arith.constant 1.000000e+00 : f32
      %27 = vector.broadcast %cst_8 : f32 to vector<2x32xf32>
      %28 = arith.addf %27, %26 : vector<2x32xf32>
      %29 = arith.divf %27, %28 : vector<2x32xf32>
      %30 = arith.mulf %21, %arg5 : vector<2x32xf32>
      %31 = arith.mulf %15, %23 : vector<2x32xf32>
      %32 = arith.addf %30, %31 : vector<2x32xf32>
      %33 = math.tanh %32 : vector<2x32xf32>
      %34 = arith.mulf %29, %33 : vector<2x32xf32>
      %35 = vector.shape_cast %34 : vector<2x32xf32> to vector<1x2x32xf32>
      %36 = arith.index_cast %arg3 : i32 to index
      %c0_9 = arith.constant 0 : index
      %c0_10 = arith.constant 0 : index
      %37 = vector.load %arg2[%36, %c0_9, %c0_10] : memref<8x2x32xf32, #tpu.memory_space<vmem>>, vector<1x2x32xf32>
      tpu.vector_store %arg2[%36, %c0_9, %c0_10], %35 {strides = array<i32>} : memref<8x2x32xf32, #tpu.memory_space<vmem>>, vector<1x2x32xf32>,
      scf.yield %34, %32 : vector<2x32xf32>, vector<2x32xf32>
    }
    %c8_i32_2 = arith.constant 8 : i32
    return
  }
}

module attributes {stable_mosaic.version = 11 : i64} {
  func.func @_linear_kernel(%arg0: i32, %arg1: i32, %arg2: i32, %arg3: memref<16x128xf32, #tpu.memory_space<vmem>>, %arg4: memref<128x128xf32, #tpu.memory_space<vmem>>, %arg5: memref<1x128xf32, #tpu.memory_space<vmem>>, %arg6: memref<16x128xf32, #tpu.memory_space<vmem>>, %arg7: memref<16x128xf32, #tpu.memory_space<vmem>>) attributes {dimension_semantics = [#tpu.dimension_semantics<parallel>, #tpu.dimension_semantics<parallel>, #tpu.dimension_semantics<arbitrary>], iteration_bounds = array<i64: 1, 1, 1>, scalar_prefetch = 0 : i64, scratch_operands = 1 : i64, tpu.core_type = #tpu.core_type<tc>, window_params = [{transform_indices = @transform_0, window_bounds = array<i64: 16, 128>}, {transform_indices = @transform_1, window_bounds = array<i64: 128, 128>}, {transform_indices = @transform_2, window_bounds = array<i64: 1, 128>}, {transform_indices = @transform_3, window_bounds = array<i64: 16, 128>}]} {
    %c0_i32 = arith.constant 0 : i32
    %0 = arith.cmpi eq, %arg2, %c0_i32 : i32
    %1 = arith.extui %0 : i1 to i32
    %c0_i32_0 = arith.constant 0 : i32
    %2 = arith.cmpi ne, %1, %c0_i32_0 : i32
    scf.if %2 {
      %cst_10 = arith.constant 0.000000e+00 : f32
      %12 = vector.broadcast %cst_10 : f32 to vector<16x128xf32>
      %c0_11 = arith.constant 0 : index
      %c0_12 = arith.constant 0 : index
      %13 = vector.load %arg7[%c0_11, %c0_12] : memref<16x128xf32, #tpu.memory_space<vmem>>, vector<16x128xf32>
      tpu.vector_store %arg7[%c0_11, %c0_12], %12 {strides = array<i32>} : memref<16x128xf32, #tpu.memory_space<vmem>>, vector<16x128xf32>,
    } else {
    }
    %c0 = arith.constant 0 : index
    %c0_1 = arith.constant 0 : index
    %3 = vector.load %arg7[%c0, %c0_1] : memref<16x128xf32, #tpu.memory_space<vmem>>, vector<16x128xf32>
    %c0_2 = arith.constant 0 : index
    %c0_3 = arith.constant 0 : index
    %4 = vector.load %arg3[%c0_2, %c0_3] : memref<16x128xf32, #tpu.memory_space<vmem>>, vector<16x128xf32>
    %c0_4 = arith.constant 0 : index
    %c0_5 = arith.constant 0 : index
    %5 = vector.load %arg4[%c0_4, %c0_5] : memref<128x128xf32, #tpu.memory_space<vmem>>, vector<128x128xf32>
    %cst = arith.constant dense<0.000000e+00> : vector<16x128xf32>
    %6 = tpu.matmul %4, %5, %cst {dimension_numbers = #tpu.dot_dimension_numbers<[1], [0], [0], [1], [0, 0, 1, 1], [], []>} : vector<16x128xf32>, vector<128x128xf32>, vector<16x128xf32> -> vector<16x128xf32>
    %7 = arith.addf %3, %6 : vector<16x128xf32>
    %c0_6 = arith.constant 0 : index
    %c0_7 = arith.constant 0 : index
    %8 = vector.load %arg7[%c0_6, %c0_7] : memref<16x128xf32, #tpu.memory_space<vmem>>, vector<16x128xf32>
    tpu.vector_store %arg7[%c0_6, %c0_7], %7 {strides = array<i32>} : memref<16x128xf32, #tpu.memory_space<vmem>>, vector<16x128xf32>,
    %c0_i32_8 = arith.constant 0 : i32
    %9 = arith.cmpi eq, %arg2, %c0_i32_8 : i32
    %10 = arith.extui %9 : i1 to i32
    %c0_i32_9 = arith.constant 0 : i32
    %11 = arith.cmpi ne, %10, %c0_i32_9 : i32
    scf.if %11 {
      %c0_10 = arith.constant 0 : index
      %c0_11 = arith.constant 0 : index
      %12 = vector.load %arg7[%c0_10, %c0_11] : memref<16x128xf32, #tpu.memory_space<vmem>>, vector<16x128xf32>
      %c0_12 = arith.constant 0 : index
      %c0_13 = arith.constant 0 : index
      %13 = vector.load %arg5[%c0_12, %c0_13] : memref<1x128xf32, #tpu.memory_space<vmem>>, vector<1x128xf32>
      %14 = vector.broadcast %13 : vector<1x128xf32> to vector<16x128xf32>
      %15 = arith.addf %12, %14 : vector<16x128xf32>
      %c0_14 = arith.constant 0 : index
      %c0_15 = arith.constant 0 : index
      %16 = vector.load %arg6[%c0_14, %c0_15] : memref<16x128xf32, #tpu.memory_space<vmem>>, vector<16x128xf32>
      tpu.vector_store %arg6[%c0_14, %c0_15], %15 {strides = array<i32>} : memref<16x128xf32, #tpu.memory_space<vmem>>, vector<16x128xf32>,
    } else {
    }
    return
  }
  func.func @transform_0(%arg0: i32, %arg1: i32, %arg2: i32) -> (i32, i32) {
    %c0_i32 = arith.constant 0 : i32
    return %arg0, %arg2 : i32, i32
  }
  func.func @transform_1(%arg0: i32, %arg1: i32, %arg2: i32) -> (i32, i32) {
    %c0_i32 = arith.constant 0 : i32
    return %arg2, %arg1 : i32, i32
  }
  func.func @transform_2(%arg0: i32, %arg1: i32, %arg2: i32) -> (i32, i32) {
    %c0_i32 = arith.constant 0 : i32
    %c0_i32_0 = arith.constant 0 : i32
    return %c0_i32, %arg1 : i32, i32
  }
  func.func @transform_3(%arg0: i32, %arg1: i32, %arg2: i32) -> (i32, i32) {
    %c0_i32 = arith.constant 0 : i32
    return %arg0, %arg1 : i32, i32
  }
}

module attributes {stable_mosaic.version = 11 : i64} {
  func.func @_gcn_prop_kernel(%arg0: i32, %arg1: memref<8x8xf32, #tpu.memory_space<vmem>>, %arg2: memref<1x8x32xf32, #tpu.memory_space<vmem>>, %arg3: memref<1x32xf32, #tpu.memory_space<vmem>>, %arg4: memref<1x8x32xf32, #tpu.memory_space<vmem>>) attributes {dimension_semantics = [#tpu.dimension_semantics<parallel>], iteration_bounds = array<i64: 2>, scalar_prefetch = 0 : i64, scratch_operands = 0 : i64, tpu.core_type = #tpu.core_type<tc>, window_params = [{pipeline_mode = #tpu.pipeline_mode<synchronous>, transform_indices = @transform_0, window_bounds = array<i64: 8, 8>}, {transform_indices = @transform_1, window_bounds = array<i64: 1, 8, 32>}, {pipeline_mode = #tpu.pipeline_mode<synchronous>, transform_indices = @transform_2, window_bounds = array<i64: 1, 32>}, {transform_indices = @transform_3, window_bounds = array<i64: 1, 8, 32>}]} {
    %c0 = arith.constant 0 : index
    %c0_0 = arith.constant 0 : index
    %0 = vector.load %arg1[%c0, %c0_0] : memref<8x8xf32, #tpu.memory_space<vmem>>, vector<8x8xf32>
    %c0_1 = arith.constant 0 : index
    %c0_2 = arith.constant 0 : index
    %c0_3 = arith.constant 0 : index
    %1 = vector.load %arg2[%c0_1, %c0_2, %c0_3] : memref<1x8x32xf32, #tpu.memory_space<vmem>>, vector<1x8x32xf32>
    %2 = vector.shape_cast %1 : vector<1x8x32xf32> to vector<8x32xf32>
    %cst = arith.constant dense<0.000000e+00> : vector<8x32xf32>
    %3 = tpu.matmul %0, %2, %cst {dimension_numbers = #tpu.dot_dimension_numbers<[1], [0], [0], [1], [0, 0, 1, 1], [], []>} : vector<8x8xf32>, vector<8x32xf32>, vector<8x32xf32> -> vector<8x32xf32>
    %c0_4 = arith.constant 0 : index
    %c0_5 = arith.constant 0 : index
    %4 = vector.load %arg3[%c0_4, %c0_5] : memref<1x32xf32, #tpu.memory_space<vmem>>, vector<1x32xf32>
    %5 = vector.broadcast %4 : vector<1x32xf32> to vector<8x32xf32>
    %6 = arith.addf %3, %5 : vector<8x32xf32>
    %cst_6 = arith.constant 0.000000e+00 : f32
    %7 = vector.broadcast %cst_6 : f32 to vector<8x32xf32>
    %8 = arith.maximumf %6, %7 : vector<8x32xf32>
    %c0_7 = arith.constant 0 : index
    %c0_8 = arith.constant 0 : index
    %c0_9 = arith.constant 0 : index
    %9 = vector.load %arg4[%c0_7, %c0_8, %c0_9] : memref<1x8x32xf32, #tpu.memory_space<vmem>>, vector<1x8x32xf32>
    %10 = vector.shape_cast %9 : vector<1x8x32xf32> to vector<8x32xf32>
    %11 = vector.shape_cast %8 : vector<8x32xf32> to vector<1x8x32xf32>
    tpu.vector_store %arg4[%c0_7, %c0_8, %c0_9], %11 {strides = array<i32>} : memref<1x8x32xf32, #tpu.memory_space<vmem>>, vector<1x8x32xf32>,
    return
  }
  func.func @transform_0(%arg0: i32) -> (i32, i32) {
    %c0_i32 = arith.constant 0 : i32
    %c0_i32_0 = arith.constant 0 : i32
    %c0_i32_1 = arith.constant 0 : i32
    return %c0_i32, %c0_i32_0 : i32, i32
  }
  func.func @transform_1(%arg0: i32) -> (i32, i32, i32) {
    %c0_i32 = arith.constant 0 : i32
    %c0_i32_0 = arith.constant 0 : i32
    %c0_i32_1 = arith.constant 0 : i32
    return %arg0, %c0_i32, %c0_i32_0 : i32, i32, i32
  }
  func.func @transform_2(%arg0: i32) -> (i32, i32) {
    %c0_i32 = arith.constant 0 : i32
    %c0_i32_0 = arith.constant 0 : i32
    %c0_i32_1 = arith.constant 0 : i32
    return %c0_i32, %c0_i32_0 : i32, i32
  }
  func.func @transform_3(%arg0: i32) -> (i32, i32, i32) {
    %c0_i32 = arith.constant 0 : i32
    %c0_i32_0 = arith.constant 0 : i32
    %c0_i32_1 = arith.constant 0 : i32
    return %arg0, %c0_i32, %c0_i32_0 : i32, i32, i32
  }
}

module attributes {stable_mosaic.version = 11 : i64} {
  func.func @_attn_kernel(%arg0: i32, %arg1: memref<1x2x8xf32, #tpu.memory_space<vmem>>, %arg2: memref<1x2x8xf32, #tpu.memory_space<vmem>>, %arg3: memref<1x2x8xf32, #tpu.memory_space<vmem>>, %arg4: memref<1x2x8xf32, #tpu.memory_space<vmem>>) attributes {dimension_semantics = [#tpu.dimension_semantics<parallel>], iteration_bounds = array<i64: 64>, scalar_prefetch = 0 : i64, scratch_operands = 0 : i64, tpu.core_type = #tpu.core_type<tc>, window_params = [{transform_indices = @transform_0, window_bounds = array<i64: 1, 2, 8>}, {transform_indices = @transform_1, window_bounds = array<i64: 1, 2, 8>}, {transform_indices = @transform_2, window_bounds = array<i64: 1, 2, 8>}, {transform_indices = @transform_3, window_bounds = array<i64: 1, 2, 8>}]} {
    %c0 = arith.constant 0 : index
    %c0_0 = arith.constant 0 : index
    %c0_1 = arith.constant 0 : index
    %0 = vector.load %arg1[%c0, %c0_0, %c0_1] : memref<1x2x8xf32, #tpu.memory_space<vmem>>, vector<1x2x8xf32>
    %1 = vector.shape_cast %0 : vector<1x2x8xf32> to vector<2x8xf32>
    %cst = arith.constant 0.353553385 : f32
    %2 = vector.broadcast %cst : f32 to vector<2x8xf32>
    %3 = arith.mulf %1, %2 : vector<2x8xf32>
    %c0_2 = arith.constant 0 : index
    %c0_3 = arith.constant 0 : index
    %c0_4 = arith.constant 0 : index
    %4 = vector.load %arg2[%c0_2, %c0_3, %c0_4] : memref<1x2x8xf32, #tpu.memory_space<vmem>>, vector<1x2x8xf32>
    %5 = vector.shape_cast %4 : vector<1x2x8xf32> to vector<2x8xf32>
    %c0_5 = arith.constant 0 : index
    %c0_6 = arith.constant 0 : index
    %c0_7 = arith.constant 0 : index
    %6 = vector.load %arg3[%c0_5, %c0_6, %c0_7] : memref<1x2x8xf32, #tpu.memory_space<vmem>>, vector<1x2x8xf32>
    %7 = vector.shape_cast %6 : vector<1x2x8xf32> to vector<2x8xf32>
    %cst_8 = arith.constant dense<0.000000e+00> : vector<2x2xf32>
    %8 = tpu.matmul %3, %5, %cst_8 {dimension_numbers = #tpu.dot_dimension_numbers<[1], [1], [0], [0], [0, 0, 1, 0], [], []>} : vector<2x8xf32>, vector<2x8xf32>, vector<2x2xf32> -> vector<2x2xf32>
    %cst_9 = arith.constant dense<0xFF800000> : vector<2xf32>
    %9 = vector.multi_reduction <maximumf>, %8, %cst_9 [1] : vector<2x2xf32> to vector<2xf32>
    %10 = vector.shape_cast %9 : vector<2xf32> to vector<2x1xf32>
    %11 = vector.broadcast %10 : vector<2x1xf32> to vector<2x2xf32>
    %12 = arith.subf %8, %11 : vector<2x2xf32>
    %13 = math.exp %12 : vector<2x2xf32>
    %cst_10 = arith.constant dense<0.000000e+00> : vector<2xf32>
    %14 = vector.multi_reduction <add>, %13, %cst_10 [1] : vector<2x2xf32> to vector<2xf32>
    %15 = vector.shape_cast %14 : vector<2xf32> to vector<2x1xf32>
    %16 = tpu.reciprocal %15 {approx = true} : vector<2x1xf32> -> vector<2x1xf32>
    %17 = vector.broadcast %16 : vector<2x1xf32> to vector<2x2xf32>
    %18 = arith.mulf %13, %17 : vector<2x2xf32>
    %cst_11 = arith.constant dense<0.000000e+00> : vector<2x8xf32>
    %19 = tpu.matmul %18, %7, %cst_11 {dimension_numbers = #tpu.dot_dimension_numbers<[1], [0], [0], [1], [0, 0, 1, 1], [], []>} : vector<2x2xf32>, vector<2x8xf32>, vector<2x8xf32> -> vector<2x8xf32>
    %c0_12 = arith.constant 0 : index
    %c0_13 = arith.constant 0 : index
    %c0_14 = arith.constant 0 : index
    %20 = vector.load %arg4[%c0_12, %c0_13, %c0_14] : memref<1x2x8xf32, #tpu.memory_space<vmem>>, vector<1x2x8xf32>
    %21 = vector.shape_cast %20 : vector<1x2x8xf32> to vector<2x8xf32>
    %22 = vector.shape_cast %19 : vector<2x8xf32> to vector<1x2x8xf32>
    tpu.vector_store %arg4[%c0_12, %c0_13, %c0_14], %22 {strides = array<i32>} : memref<1x2x8xf32, #tpu.memory_space<vmem>>, vector<1x2x8xf32>,
    return
  }
  func.func @transform_0(%arg0: i32) -> (i32, i32, i32) {
    %c0_i32 = arith.constant 0 : i32
    %c0_i32_0 = arith.constant 0 : i32
    %c0_i32_1 = arith.constant 0 : i32
    return %arg0, %c0_i32, %c0_i32_0 : i32, i32, i32
  }
  func.func @transform_1(%arg0: i32) -> (i32, i32, i32) {
    %c0_i32 = arith.constant 0 : i32
    %c0_i32_0 = arith.constant 0 : i32
    %c0_i32_1 = arith.constant 0 : i32
    return %arg0, %c0_i32, %c0_i32_0 : i32, i32, i32
  }
  func.func @transform_2(%arg0: i32) -> (i32, i32, i32) {
    %c0_i32 = arith.constant 0 : i32
    %c0_i32_0 = arith.constant 0 : i32
    %c0_i32_1 = arith.constant 0 : i32
    return %arg0, %c0_i32, %c0_i32_0 : i32, i32, i32
  }
  func.func @transform_3(%arg0: i32) -> (i32, i32, i32) {
    %c0_i32 = arith.constant 0 : i32
    %c0_i32_0 = arith.constant 0 : i32
    %c0_i32_1 = arith.constant 0 : i32
    return %arg0, %c0_i32, %c0_i32_0 : i32, i32, i32
  }
}

module attributes {stable_mosaic.version = 11 : i64} {
  func.func @_linear_kernel(%arg0: i32, %arg1: i32, %arg2: i32, %arg3: memref<8x512xf32, #tpu.memory_space<vmem>>, %arg4: memref<512x128xf32, #tpu.memory_space<vmem>>, %arg5: memref<1x128xf32, #tpu.memory_space<vmem>>, %arg6: memref<8x128xf32, #tpu.memory_space<vmem>>, %arg7: memref<8x128xf32, #tpu.memory_space<vmem>>) attributes {dimension_semantics = [#tpu.dimension_semantics<parallel>, #tpu.dimension_semantics<parallel>, #tpu.dimension_semantics<arbitrary>], iteration_bounds = array<i64: 1, 1, 1>, scalar_prefetch = 0 : i64, scratch_operands = 1 : i64, tpu.core_type = #tpu.core_type<tc>, window_params = [{transform_indices = @transform_0, window_bounds = array<i64: 8, 512>}, {transform_indices = @transform_1, window_bounds = array<i64: 512, 128>}, {transform_indices = @transform_2, window_bounds = array<i64: 1, 128>}, {transform_indices = @transform_3, window_bounds = array<i64: 8, 128>}]} {
    %c0_i32 = arith.constant 0 : i32
    %0 = arith.cmpi eq, %arg2, %c0_i32 : i32
    %1 = arith.extui %0 : i1 to i32
    %c0_i32_0 = arith.constant 0 : i32
    %2 = arith.cmpi ne, %1, %c0_i32_0 : i32
    scf.if %2 {
      %cst_10 = arith.constant 0.000000e+00 : f32
      %12 = vector.broadcast %cst_10 : f32 to vector<8x128xf32>
      %c0_11 = arith.constant 0 : index
      %c0_12 = arith.constant 0 : index
      %13 = vector.load %arg7[%c0_11, %c0_12] : memref<8x128xf32, #tpu.memory_space<vmem>>, vector<8x128xf32>
      tpu.vector_store %arg7[%c0_11, %c0_12], %12 {strides = array<i32>} : memref<8x128xf32, #tpu.memory_space<vmem>>, vector<8x128xf32>,
    } else {
    }
    %c0 = arith.constant 0 : index
    %c0_1 = arith.constant 0 : index
    %3 = vector.load %arg7[%c0, %c0_1] : memref<8x128xf32, #tpu.memory_space<vmem>>, vector<8x128xf32>
    %c0_2 = arith.constant 0 : index
    %c0_3 = arith.constant 0 : index
    %4 = vector.load %arg3[%c0_2, %c0_3] : memref<8x512xf32, #tpu.memory_space<vmem>>, vector<8x512xf32>
    %c0_4 = arith.constant 0 : index
    %c0_5 = arith.constant 0 : index
    %5 = vector.load %arg4[%c0_4, %c0_5] : memref<512x128xf32, #tpu.memory_space<vmem>>, vector<512x128xf32>
    %cst = arith.constant dense<0.000000e+00> : vector<8x128xf32>
    %6 = tpu.matmul %4, %5, %cst {dimension_numbers = #tpu.dot_dimension_numbers<[1], [0], [0], [1], [0, 0, 1, 1], [], []>} : vector<8x512xf32>, vector<512x128xf32>, vector<8x128xf32> -> vector<8x128xf32>
    %7 = arith.addf %3, %6 : vector<8x128xf32>
    %c0_6 = arith.constant 0 : index
    %c0_7 = arith.constant 0 : index
    %8 = vector.load %arg7[%c0_6, %c0_7] : memref<8x128xf32, #tpu.memory_space<vmem>>, vector<8x128xf32>
    tpu.vector_store %arg7[%c0_6, %c0_7], %7 {strides = array<i32>} : memref<8x128xf32, #tpu.memory_space<vmem>>, vector<8x128xf32>,
    %c0_i32_8 = arith.constant 0 : i32
    %9 = arith.cmpi eq, %arg2, %c0_i32_8 : i32
    %10 = arith.extui %9 : i1 to i32
    %c0_i32_9 = arith.constant 0 : i32
    %11 = arith.cmpi ne, %10, %c0_i32_9 : i32
    scf.if %11 {
      %c0_10 = arith.constant 0 : index
      %c0_11 = arith.constant 0 : index
      %12 = vector.load %arg7[%c0_10, %c0_11] : memref<8x128xf32, #tpu.memory_space<vmem>>, vector<8x128xf32>
      %c0_12 = arith.constant 0 : index
      %c0_13 = arith.constant 0 : index
      %13 = vector.load %arg5[%c0_12, %c0_13] : memref<1x128xf32, #tpu.memory_space<vmem>>, vector<1x128xf32>
      %14 = vector.broadcast %13 : vector<1x128xf32> to vector<8x128xf32>
      %15 = arith.addf %12, %14 : vector<8x128xf32>
      %c0_14 = arith.constant 0 : index
      %c0_15 = arith.constant 0 : index
      %16 = vector.load %arg6[%c0_14, %c0_15] : memref<8x128xf32, #tpu.memory_space<vmem>>, vector<8x128xf32>
      tpu.vector_store %arg6[%c0_14, %c0_15], %15 {strides = array<i32>} : memref<8x128xf32, #tpu.memory_space<vmem>>, vector<8x128xf32>,
    } else {
    }
    return
  }
  func.func @transform_0(%arg0: i32, %arg1: i32, %arg2: i32) -> (i32, i32) {
    %c0_i32 = arith.constant 0 : i32
    return %arg0, %arg2 : i32, i32
  }
  func.func @transform_1(%arg0: i32, %arg1: i32, %arg2: i32) -> (i32, i32) {
    %c0_i32 = arith.constant 0 : i32
    return %arg2, %arg1 : i32, i32
  }
  func.func @transform_2(%arg0: i32, %arg1: i32, %arg2: i32) -> (i32, i32) {
    %c0_i32 = arith.constant 0 : i32
    %c0_i32_0 = arith.constant 0 : i32
    return %c0_i32, %arg1 : i32, i32
  }
  func.func @transform_3(%arg0: i32, %arg1: i32, %arg2: i32) -> (i32, i32) {
    %c0_i32 = arith.constant 0 : i32
    return %arg0, %arg1 : i32, i32
  }
}

</mosaic_0001>

<llo_original>
// kernel: dual_graph_relation_forward.21
$region0: #{dual_graph_relation_forward.21}
  #allocation0 [shape = 'u32[]', space=smem, size = 0x4, offset = 0x4, fixed_abs, tag = 'smem constant byte address 0x4 - core index']
  #allocation1 [shape = 'u32[144,128]{1,0:T(1,128)}', space=vmem, size = 0x12000, scoped, tag = 'internal scratch']
  #allocation2 [shape = 'f32[16,128]{1,0:T(8,128)}', space=vmem, size = 0x2000, scoped, tag = 'scratch operand']
  %s0 = inlined_call_operand.vmem [shape: f32[16,128], index: 0, kind: input, shape index: {}]
  %s1 = inlined_call_operand.vmem [shape: f32[128,128], index: 1, kind: input, shape index: {}]
  %s2 = inlined_call_operand.vmem [shape: f32[1,128], index: 2, kind: input, shape index: {}]
  %s3 = inlined_call_operand.vmem [shape: f32[16,128], index: 3, kind: output, shape index: {}]
  %s4 = sld [smem:[#allocation0]]
  $region30: #{dual_graph_relation_forward.21} parent=0
    _
  %s6 = ssub.s32 1, %s4
  %s7 = scalar_select 0, %s6, %s4
  // Predicated region
  $region2: #{dual_graph_relation_forward.21} parent=0 // pred_check
    _
  $region3: #{dual_graph_relation_forward.21} parent=0 // pred_check_branch
    %9 = sbr.rel (0) target = $region5
  $region4: #{dual_graph_relation_forward.21} parent=0 // pred_region
    _
  $region5: #{dual_graph_relation_forward.21} parent=0 // pred_fallthru
    _
  // Predicated region
  $region6: #{dual_graph_relation_forward.21} parent=0 // pred_check
    _
  $region7: #{dual_graph_relation_forward.21} parent=0 // pred_check_branch
    %11 = sbr.rel (0) target = $region9
  $region8: #{dual_graph_relation_forward.21} parent=0 // pred_region
    _
  $region9: #{dual_graph_relation_forward.21} parent=0 // pred_fallthru
    _
  // Predicated region
  $region10: #{dual_graph_relation_forward.21} parent=0 // pred_check
    _
  $region11: #{dual_graph_relation_forward.21} parent=0 // pred_check_branch
    %13 = sbr.rel (0) target = $region13
  $region12: #{dual_graph_relation_forward.21} parent=0 // pred_region
    _
  $region13: #{dual_graph_relation_forward.21} parent=0 // pred_fallthru
    _
  %p14 = scmp.eq.s32.totalorder 0, 0
  // Predicated region
  $region14: #{dual_graph_relation_forward.21} parent=0 // pred_check
    %p15 = pneg %p14
  $region15: #{dual_graph_relation_forward.21} parent=0 // pred_check_branch
    %17 = sbr.rel (%p15) target = $region17
  $region16: #{dual_graph_relation_forward.21} parent=0 // pred_region
    %18 = vst [vmem:[#allocation2] sm:$0xff] 0.0
    %19 = vst [vmem:[#allocation2 + $0x8] sm:$0xff] 0.0
  $region17: #{dual_graph_relation_forward.21} parent=0 // pred_fallthru
    _
  %v20 = vld [vmem:[#allocation2] sm:$0xff]
  %v21 = vld [vmem:[#allocation2 + $0x8] sm:$0xff]
  %v22 = vld [vmem:[%s0] sm:$0xff]
  %v23 = vld [vmem:[%s0 + $0x8] sm:$0xff]
  %v24 = vld [vmem:[%s1] sm:$0xff]
  %v25 = vld [vmem:[%s1 + $0x8] sm:$0xff]
  %v26 = vld [vmem:[%s1 + $0x10] sm:$0xff]
  %v27 = vld [vmem:[%s1 + $0x18] sm:$0xff]
  %v28 = vld [vmem:[%s1 + $0x20] sm:$0xff]
  %v29 = vld [vmem:[%s1 + $0x28] sm:$0xff]
  %v30 = vld [vmem:[%s1 + $0x30] sm:$0xff]
  %v31 = vld [vmem:[%s1 + $0x38] sm:$0xff]
  %v32 = vld [vmem:[%s1 + $0x40] sm:$0xff]
  %v33 = vld [vmem:[%s1 + $0x48] sm:$0xff]
  %v34 = vld [vmem:[%s1 + $0x50] sm:$0xff]
  %v35 = vld [vmem:[%s1 + $0x58] sm:$0xff]
  %v36 = vld [vmem:[%s1 + $0x60] sm:$0xff]
  %v37 = vld [vmem:[%s1 + $0x68] sm:$0xff]
  %v38 = vld [vmem:[%s1 + $0x70] sm:$0xff]
  %v39 = vld [vmem:[%s1 + $0x78] sm:$0xff]
  %40 = vmatprep.subr.mxu0 0.0
  %41 = vmatpush1.msra.mxu0 %v39
  %42 = vmatprep.subr.mxu0 0.0
  %43 = vmatpush1.msra.mxu0 %v38
  %44 = vmatprep.subr.mxu0 0.0
  %45 = vmatpush1.msra.mxu0 %v37
  %46 = vmatprep.subr.mxu0 0.0
  %47 = vmatpush1.msra.mxu0 %v36
  %48 = vmatprep.subr.mxu0 0.0
  %49 = vmatpush1.msra.mxu0 %v35
  %50 = vmatprep.subr.mxu0 0.0
  %51 = vmatpush1.msra.mxu0 %v34
  %52 = vmatprep.subr.mxu0 0.0
  %53 = vmatpush1.msra.mxu0 %v33
  %54 = vmatprep.subr.mxu0 0.0
  %55 = vmatpush1.msra.mxu0 %v32
  %56 = vmatprep.subr.mxu0 0.0
  %57 = vmatpush1.msra.mxu0 %v31
  %58 = vmatprep.subr.mxu0 0.0
  %59 = vmatpush1.msra.mxu0 %v30
  %60 = vmatprep.subr.mxu0 0.0
  %61 = vmatpush1.msra.mxu0 %v29
  %62 = vmatprep.subr.mxu0 0.0
  %63 = vmatpush1.msra.mxu0 %v28
  %64 = vmatprep.subr.mxu0 0.0
  %65 = vmatpush1.msra.mxu0 %v27
  %66 = vmatprep.subr.mxu0 0.0
  %67 = vmatpush1.msra.mxu0 %v26
  %68 = vmatprep.subr.mxu0 0.0
  %69 = vmatpush1.msra.mxu0 %v25
  %70 = vmatprep.subr.mxu0 0.0
  %71 = vmatpush1.msra.mxu0 %v24
  %72 = vmatprep.subr.mxu0 0.0
  %73 = vmatpush2.msra.mxu0 0.0
  %74 = vmatprep.subr.mxu0 0.0
  %75 = vmatpush2.msra.mxu0 0.0
  %76 = vmatprep.subr.mxu0 0.0
  %77 = vmatpush2.msra.mxu0 0.0
  %78 = vmatprep.subr.mxu0 0.0
  %79 = vmatpush2.msra.mxu0 0.0
  %80 = vmatprep.subr.mxu0 0.0
  %81 = vmatpush2.msra.mxu0 0.0
  %82 = vmatprep.subr.mxu0 0.0
  %83 = vmatpush2.msra.mxu0 0.0
  %84 = vmatprep.subr.mxu0 0.0
  %85 = vmatpush2.msra.mxu0 0.0
  %86 = vmatprep.subr.mxu0 0.0
  %87 = vmatpush2.msra.mxu0 0.0
  %88 = vmatprep.subr.mxu0 0.0
  %89 = vmatpush2.msra.mxu0 0.0
  %90 = vmatprep.subr.mxu0 0.0
  %91 = vmatpush2.msra.mxu0 0.0
  %92 = vmatprep.subr.mxu0 0.0
  %93 = vmatpush2.msra.mxu0 0.0
  %94 = vmatprep.subr.mxu0 0.0
  %95 = vmatpush2.msra.mxu0 0.0
  %96 = vmatprep.subr.mxu0 0.0
  %97 = vmatpush2.msra.mxu0 0.0
  %98 = vmatprep.subr.mxu0 0.0
  %99 = vmatpush2.msra.mxu0 0.0
  %100 = vmatprep.subr.mxu0 0.0
  %101 = vmatpush2.msra.mxu0 0.0
  %102 = vmatprep.subr.mxu0 0.0
  %103 = vmatpush2.msra.mxu0 0.0
  %104 = vmatprep.mubr.f32.mxu0 0.0
  %105 = vmatmul.mubr.f32.gmra.mxu0 %v22
  %v106 = vpop.f32.mrf.mxu0
  %v107 = vadd.f32 0.0, %v106
  %v108 = vpop.f32.mrf.mxu0
  %109 = vmatprep.mubr.f32.mxu0 0.0
  %110 = vmatmul.mubr.f32.gmra.mxu0 %v23
  %v111 = vpop.f32.mrf.mxu0
  %v112 = vadd.f32 0.0, %v111
  %v113 = vpop.f32.mrf.mxu0
  %114 = vdwg.mxu0
  %v115 = vadd.f32 %v20, %v107
  %v116 = vadd.f32 %v21, %v112
  %117 = vst [vmem:[#allocation2] sm:$0xff] %v115
  %118 = vst [vmem:[#allocation2 + $0x8] sm:$0xff] %v116
  // Predicated region
  $region18: #{dual_graph_relation_forward.21} parent=0 // pred_check
    %p119 = pneg %p14
  $region19: #{dual_graph_relation_forward.21} parent=0 // pred_check_branch
    %121 = sbr.rel (%p119) target = $region21
  $region20: #{dual_graph_relation_forward.21} parent=0 // pred_region
    %v122 = vld [vmem:[#allocation2] sm:$0xff]
    %v123 = vld [vmem:[#allocation2 + $0x8] sm:$0xff]
    %v124 = vld [vmem:[%s2] sm:$0x1]
    %v126 = vlaneseq
    %v127 = vshrl.u32 %v126, 7
    %v128 = vsub.s32 0, %v127
    %v129 = vrot.slane %v124, %v128
    %v131 = vadd.f32 %v122, %v129
    %v132 = vadd.f32 %v123, %v129
    %133 = vst [vmem:[%s3] sm:$0xff] %v131
    %134 = vst [vmem:[%s3 + $0x8] sm:$0xff] %v132
  $region21: #{dual_graph_relation_forward.21} parent=0 // pred_fallthru
    _
  // Predicated region
  $region22: #{dual_graph_relation_forward.21} parent=0 // pred_check
    _
  $region23: #{dual_graph_relation_forward.21} parent=0 // pred_check_branch
    %136 = sbr.rel (0) target = $region25
  $region24: #{dual_graph_relation_forward.21} parent=0 // pred_region
    _
  $region25: #{dual_graph_relation_forward.21} parent=0 // pred_fallthru
    _
  // Predicated region
  $region26: #{dual_graph_relation_forward.21} parent=0 // pred_check
    _
  $region27: #{dual_graph_relation_forward.21} parent=0 // pred_check_branch
    %138 = sbr.rel (0) target = $region29
  $region28: #{dual_graph_relation_forward.21} parent=0 // pred_region
    _
  $region29: #{dual_graph_relation_forward.21} parent=0 // pred_fallthru
    _

// kernel: dual_graph_relation_forward.23
$region0: #{dual_graph_relation_forward.23}
  #allocation0 [shape = 'u32[]', space=smem, size = 0x4, offset = 0x4, fixed_abs, tag = 'smem constant byte address 0x4 - core index']
  #allocation1 [shape = 'u32[144,128]{1,0:T(1,128)}', space=vmem, size = 0x12000, scoped, tag = 'internal scratch']
  %s0 = inlined_call_operand.vmem [shape: f32[8,2,128], index: 0, kind: input, shape index: {}]
  %s1 = inlined_call_operand.vmem [shape: f32[32,128], index: 1, kind: input, shape index: {}]
  %s2 = inlined_call_operand.vmem [shape: f32[8,2,32], index: 2, kind: output, shape index: {}]
  %s3 = sld [smem:[#allocation0]]
  $region25: #{dual_graph_relation_forward.23} parent=0
    _
  %s5 = ssub.s32 1, %s3
  %s6 = scalar_select 0, %s5, %s3
  // Predicated region
  $region2: #{dual_graph_relation_forward.23} parent=0 // pred_check
    _
  $region3: #{dual_graph_relation_forward.23} parent=0 // pred_check_branch
    %8 = sbr.rel (0) target = $region5
  $region4: #{dual_graph_relation_forward.23} parent=0 // pred_region
    _
  $region5: #{dual_graph_relation_forward.23} parent=0 // pred_fallthru
    _
  // Predicated region
  $region6: #{dual_graph_relation_forward.23} parent=0 // pred_check
    _
  $region7: #{dual_graph_relation_forward.23} parent=0 // pred_check_branch
    %10 = sbr.rel (0) target = $region9
  $region8: #{dual_graph_relation_forward.23} parent=0 // pred_region
    _
  $region9: #{dual_graph_relation_forward.23} parent=0 // pred_fallthru
    _
  %v11 = vld [vmem:[%s1] sm:$0xff]
  %v12 = vld [vmem:[%s1 + $0x8] sm:$0xff]
  %v13 = vld [vmem:[%s1 + $0x10] sm:$0xff]
  %v14 = vld [vmem:[%s1 + $0x18] sm:$0xff]
  loop: start=0, step=1, limit=8
  $region10: #{dual_graph_relation_forward.23} parent=0 // loop_pre_header
    _
  $region11: #{dual_graph_relation_forward.23} parent=0 // loop_header
    %s16 = sphi 0, %s20
    %p17 = scmp.ge.s32.totalorder %s16, 8
    %v21 = vphi 0.0, %v126
    %v22 = vphi 0.0, %v120
  $region12: #{dual_graph_relation_forward.23} parent=0 // loop_header_branch
    %19 = sbr.rel (%p17) target = $region16
  $region13: #{dual_graph_relation_forward.23} parent=0 // loop_body
    %s23 = smul.u32 %s16, 2
    %s24 = scalar_lea.vmem %s0, %s23
    %v25 = vld [vmem:[%s24] sm:$0x3]
    %27 = vrot.lane.b32.xlu0 %v21, 32
    %v28 = vpop.permute.xlu0 %27
    %vm29 = vcmask 261120
    %v30 = vsel %vm29, %v28, 0
    %32 = vmatprep.subr.mxu0 0.0
    %33 = vmatpush1.msra.mxu0 0.0
    %34 = vmatprep.subr.mxu0 0.0
    %35 = vmatpush1.msra.mxu0 0.0
    %36 = vmatprep.subr.mxu0 0.0
    %37 = vmatpush1.msra.mxu0 0.0
    %38 = vmatprep.subr.mxu0 0.0
    %39 = vmatpush1.msra.mxu0 0.0
    %40 = vmatprep.subr.mxu0 0.0
    %41 = vmatpush1.msra.mxu0 0.0
    %42 = vmatprep.subr.mxu0 0.0
    %43 = vmatpush1.msra.mxu0 0.0
    %44 = vmatprep.subr.mxu0 0.0
    %45 = vmatpush1.msra.mxu0 0.0
    %46 = vmatprep.subr.mxu0 0.0
    %47 = vmatpush1.msra.mxu0 0.0
    %48 = vmatprep.subr.mxu0 0.0
    %49 = vmatpush1.msra.mxu0 0.0
    %50 = vmatprep.subr.mxu0 0.0
    %51 = vmatpush1.msra.mxu0 0.0
    %52 = vmatprep.subr.mxu0 0.0
    %53 = vmatpush1.msra.mxu0 0.0
    %54 = vmatprep.subr.mxu0 0.0
    %55 = vmatpush1.msra.mxu0 0.0
    %56 = vmatprep.subr.mxu0 0.0
    %57 = vmatpush1.msra.mxu0 %v14
    %58 = vmatprep.subr.mxu0 0.0
    %59 = vmatpush1.msra.mxu0 %v13
    %60 = vmatprep.subr.mxu0 0.0
    %61 = vmatpush1.msra.mxu0 %v12
    %62 = vmatprep.subr.mxu0 0.0
    %63 = vmatpush1.msra.mxu0 %v11
    %64 = vmatprep.subr.mxu0 0.0
    %65 = vmatpush2.msra.mxu0 0.0
    %66 = vmatprep.subr.mxu0 0.0
    %67 = vmatpush2.msra.mxu0 0.0
    %68 = vmatprep.subr.mxu0 0.0
    %69 = vmatpush2.msra.mxu0 0.0
    %70 = vmatprep.subr.mxu0 0.0
    %71 = vmatpush2.msra.mxu0 0.0
    %72 = vmatprep.subr.mxu0 0.0
    %73 = vmatpush2.msra.mxu0 0.0
    %74 = vmatprep.subr.mxu0 0.0
    %75 = vmatpush2.msra.mxu0 0.0
    %76 = vmatprep.subr.mxu0 0.0
    %77 = vmatpush2.msra.mxu0 0.0
    %78 = vmatprep.subr.mxu0 0.0
    %79 = vmatpush2.msra.mxu0 0.0
    %80 = vmatprep.subr.mxu0 0.0
    %81 = vmatpush2.msra.mxu0 0.0
    %82 = vmatprep.subr.mxu0 0.0
    %83 = vmatpush2.msra.mxu0 0.0
    %84 = vmatprep.subr.mxu0 0.0
    %85 = vmatpush2.msra.mxu0 0.0
    %86 = vmatprep.subr.mxu0 0.0
    %87 = vmatpush2.msra.mxu0 0.0
    %88 = vmatprep.subr.mxu0 0.0
    %89 = vmatpush2.msra.mxu0 0.0
    %90 = vmatprep.subr.mxu0 0.0
    %91 = vmatpush2.msra.mxu0 0.0
    %92 = vmatprep.subr.mxu0 0.0
    %93 = vmatpush2.msra.mxu0 0.0
    %94 = vmatprep.subr.mxu0 0.0
    %95 = vmatpush2.msra.mxu0 0.0
    %96 = vmatprep.mubr.f32.mxu0 0.0
    %97 = vmatmul.mubr.f32.gmra.mxu0 %v30
    %v98 = vpop.f32.mrf.mxu0
    %v99 = vadd.f32 0.0, %v98
    %v100 = vpop.f32.mrf.mxu0
    %101 = vdwg.mxu0
    %v102 = vadd.f32 %v25, %v99
    %v103 = vxor.u32 %v102, 2147483648
    %v104 = vmul.f32 %v103, 1.442695
    %v105 = vpow.pop %v104
    %v106 = vadd.f32 %v105, 1.0
    %v107 = vrcp.pop %v106
    %v108 = vmul.f32 1.0, %v107
    %v109 = vtanh.pop %v102
    %v110 = vmul.f32 %v108, %v22
    %112 = vrot.lane.b32.xlu0 %v109, 64
    %v113 = vpop.permute.xlu0 %112
    %v115 = vmul.f32 %v108, %v113
    %117 = vrot.lane.b32.xlu0 %v115, 32
    %v118 = vpop.permute.xlu0 %117
    %v120 = vadd.f32 %v110, %v118
    %v121 = vtanh.pop %v120
    %123 = vrot.lane.b32.xlu0 %v121, 64
    %v124 = vpop.permute.xlu0 %123
    %v126 = vmul.f32 %v108, %v124
    %128 = vrot.lane.b32.xlu0 %v126, 32
    %v129 = vpop.permute.xlu0 %128
    %s131 = scalar_lea.vmem %s2, %s23
    %vm132 = vcmask 254976
    %133 = vst.msk [vmem:[%s131] sm:$0x3] %vm132, %v129
  $region14: #{dual_graph_relation_forward.23} parent=0 // loop_footer
    %s20 = sadd.s32 1, %s16
  $region15: #{dual_graph_relation_forward.23} parent=0 // loop_footer_branch
    %15 = sbr.rel target = $region11
  $region16: #{dual_graph_relation_forward.23} parent=0 // loop_exit
    _
  // Predicated region
  $region17: #{dual_graph_relation_forward.23} parent=0 // pred_check
    _
  $region18: #{dual_graph_relation_forward.23} parent=0 // pred_check_branch
    %135 = sbr.rel (0) target = $region20
  $region19: #{dual_graph_relation_forward.23} parent=0 // pred_region
    _
  $region20: #{dual_graph_relation_forward.23} parent=0 // pred_fallthru
    _
  // Predicated region
  $region21: #{dual_graph_relation_forward.23} parent=0 // pred_check
    _
  $region22: #{dual_graph_relation_forward.23} parent=0 // pred_check_branch
    %137 = sbr.rel (0) target = $region24
  $region23: #{dual_graph_relation_forward.23} parent=0 // pred_region
    _
  $region24: #{dual_graph_relation_forward.23} parent=0 // pred_fallthru
    _

// kernel: dual_graph_relation_forward.25
$region0: #{dual_graph_relation_forward.25}
  #allocation0 [shape = 'u32[]', space=smem, size = 0x4, offset = 0x4, fixed_abs, tag = 'smem constant byte address 0x4 - core index']
  #allocation1 [shape = 'u32[144,128]{1,0:T(1,128)}', space=vmem, size = 0x12000, scoped, tag = 'internal scratch']
  %s0 = inlined_call_operand.vmem [shape: f32[8,8], index: 0, kind: input, shape index: {}]
  %s1 = inlined_call_operand.vmem [shape: f32[2,8,32], index: 1, kind: input, shape index: {}]
  %s2 = inlined_call_operand.vmem [shape: f32[1,32], index: 2, kind: input, shape index: {}]
  %s3 = inlined_call_operand.vmem [shape: f32[2,8,32], index: 3, kind: output, shape index: {}]
  %s4 = sld [smem:[#allocation0]]
  $region45: #{dual_graph_relation_forward.25} parent=0
    _
  %s6 = ssub.s32 1, %s4
  %s7 = scalar_select 0, %s6, %s4
  loop: start=0, step=1, limit=4
  $region2: #{dual_graph_relation_forward.25} parent=0 // loop_pre_header
    _
  $region3: #{dual_graph_relation_forward.25} parent=0 // loop_header
    %s9 = sphi 0, %s13
    %p10 = scmp.ge.s32.totalorder %s9, 4
    %s17 = sphi 0, %s17
    %s19 = sphi 0, %s17
    %s20 = sphi 0, %s19
    %s34 = sphi 0, %s20
    %s40 = sphi 0, %s42
    %s43 = sphi 0, %s40
    %s44 = sphi 0, %s43
    %s60 = sphi 0, %s44
    %s64 = sphi 0, %s64
    %s66 = sphi 0, %s64
    %s67 = sphi 0, %s66
    %s81 = sphi 0, %s67
    %s87 = sphi 0, %s89
    %s90 = sphi 0, %s87
    %s91 = sphi 0, %s90
    %s107 = sphi 0, %s91
  $region4: #{dual_graph_relation_forward.25} parent=0 // loop_header_branch
    %12 = sbr.rel (%p10) target = $region8
  $region5: #{dual_graph_relation_forward.25} parent=0 // loop_body
    %s14 = ssub.s32 %s9, 1
    %s15 = ssub.s32 %s9, 2
    %s16 = sadd.s32 %s9, 1
    %s18 = sadd.s32 %s17, 1
    %p21 = scmp.eq.s32.totalorder %s9, 1
    %p22 = scmp.ne.s32.totalorder %s17, %s19
    %p23 = scmp.eq.s32.totalorder %s9, 0
    %p24 = por %p22, %p23
    %p25 = scmp.ne.s32.totalorder %s17, %s19
    %p26 = scmp.eq.s32.totalorder %s14, 1
    %p27 = por %p25, %p26
    %p28 = scmp.ne.s32.totalorder %s19, %s20
    %p29 = scmp.eq.s32.totalorder %s14, 0
    %p30 = por %p28, %p29
    %p31 = scmp.ne.s32.totalorder %s19, %s20
    %p32 = scmp.eq.s32.totalorder %s15, 1
    %p33 = por %p31, %p32
    %p35 = scmp.ne.s32.totalorder %s20, %s34
    %p36 = scmp.eq.s32.totalorder %s15, 0
    %p37 = por %p35, %p36
    %s38 = ssub.s32 %s9, %s16
    %p39 = scmp.eq.s32.totalorder %s38, 0
    %s41 = sadd.s32 %s40, 1
    %s42 = scalar_select %p39, %s40, %s41
    %p45 = pneg %p39
    %p46 = scmp.eq.s32.totalorder %s9, 1
    %p47 = por %p45, %p46
    %p48 = scmp.ne.s32.totalorder %s40, %s43
    %p49 = scmp.eq.s32.totalorder %s9, 0
    %p50 = por %p48, %p49
    %p51 = scmp.ne.s32.totalorder %s40, %s43
    %p52 = scmp.eq.s32.totalorder %s14, 1
    %p53 = por %p51, %p52
    %p54 = scmp.ne.s32.totalorder %s43, %s44
    %p55 = scmp.eq.s32.totalorder %s14, 0
    %p56 = por %p54, %p55
    %p57 = scmp.ne.s32.totalorder %s43, %s44
    %p58 = scmp.eq.s32.totalorder %s15, 1
    %p59 = por %p57, %p58
    %p61 = scmp.ne.s32.totalorder %s44, %s60
    %p62 = scmp.eq.s32.totalorder %s15, 0
    %p63 = por %p61, %p62
    %s65 = sadd.s32 %s64, 1
    %p68 = scmp.eq.s32.totalorder %s9, 1
    %p69 = scmp.ne.s32.totalorder %s64, %s66
    %p70 = scmp.eq.s32.totalorder %s9, 0
    %p71 = por %p69, %p70
    %p72 = scmp.ne.s32.totalorder %s64, %s66
    %p73 = scmp.eq.s32.totalorder %s14, 1
    %p74 = por %p72, %p73
    %p75 = scmp.ne.s32.totalorder %s66, %s67
    %p76 = scmp.eq.s32.totalorder %s14, 0
    %p77 = por %p75, %p76
    %p78 = scmp.ne.s32.totalorder %s66, %s67
    %p79 = scmp.eq.s32.totalorder %s15, 1
    %p80 = por %p78, %p79
    %p82 = scmp.ne.s32.totalorder %s67, %s81
    %p83 = scmp.eq.s32.totalorder %s15, 0
    %p84 = por %p82, %p83
    %s85 = ssub.s32 %s9, %s16
    %p86 = scmp.eq.s32.totalorder %s85, 0
    %s88 = sadd.s32 %s87, 1
    %s89 = scalar_select %p86, %s87, %s88
    %p92 = pneg %p86
    %p93 = scmp.eq.s32.totalorder %s9, 1
    %p94 = por %p92, %p93
    %p95 = scmp.ne.s32.totalorder %s87, %s90
    %p96 = scmp.eq.s32.totalorder %s9, 0
    %p97 = por %p95, %p96
    %p98 = scmp.ne.s32.totalorder %s87, %s90
    %p99 = scmp.eq.s32.totalorder %s14, 1
    %p100 = por %p98, %p99
    %p101 = scmp.ne.s32.totalorder %s90, %s91
    %p102 = scmp.eq.s32.totalorder %s14, 0
    %p103 = por %p101, %p102
    %p104 = scmp.ne.s32.totalorder %s90, %s91
    %p105 = scmp.eq.s32.totalorder %s15, 1
    %p106 = por %p104, %p105
    %p108 = scmp.ne.s32.totalorder %s91, %s107
    %p109 = scmp.eq.s32.totalorder %s15, 0
    %p110 = por %p108, %p109
    %p111 = scmp.le.s32.totalorder 1, %s9
    %p112 = scmp.lt.s32.totalorder %s9, 3
    %p113 = pnand %p111, %p112
    %p114 = pneg %p113
    // Predicated region
    $region9: #{dual_graph_relation_forward.25} parent=5 // pred_check
      _
    $region10: #{dual_graph_relation_forward.25} parent=5 // pred_check_branch
      %116 = sbr.rel (%p113) target = $region12
    $region11: #{dual_graph_relation_forward.25} parent=5 // pred_region
      %s117 = ssub.s32 %s9, 1
      // Predicated region
      $region13: #{dual_graph_relation_forward.25} parent=11 // pred_check
        %p118 = pneg %p30
      $region14: #{dual_graph_relation_forward.25} parent=11 // pred_check_branch
        %120 = sbr.rel (%p118) target = $region16
      $region15: #{dual_graph_relation_forward.25} parent=11 // pred_region
        _
      $region16: #{dual_graph_relation_forward.25} parent=11 // pred_fallthru
        _
      // Predicated region
      $region17: #{dual_graph_relation_forward.25} parent=11 // pred_check
        %p121 = pneg %p77
      $region18: #{dual_graph_relation_forward.25} parent=11 // pred_check_branch
        %123 = sbr.rel (%p121) target = $region20
      $region19: #{dual_graph_relation_forward.25} parent=11 // pred_region
        _
      $region20: #{dual_graph_relation_forward.25} parent=11 // pred_fallthru
        _
    $region12: #{dual_graph_relation_forward.25} parent=5 // pred_fallthru
      _
    %p124 = scmp.lt.s32.totalorder %s9, 2
    // Predicated region
    $region21: #{dual_graph_relation_forward.25} parent=5 // pred_check
      %p125 = pneg %p124
    $region22: #{dual_graph_relation_forward.25} parent=5 // pred_check_branch
      %127 = sbr.rel (%p125) target = $region24
    $region23: #{dual_graph_relation_forward.25} parent=5 // pred_region
      // Predicated region
      $region25: #{dual_graph_relation_forward.25} parent=23 // pred_check
        %p128 = pneg %p50
      $region26: #{dual_graph_relation_forward.25} parent=23 // pred_check_branch
        %130 = sbr.rel (%p128) target = $region28
      $region27: #{dual_graph_relation_forward.25} parent=23 // pred_region
        %p131 = scmp.lt.s32.totalorder %s9, 1
        %s132 = scalar_select %p131, %s9, 1
        %s133 = smul.addr %s132, 8
        %s134 = scalar_lea.vmem %s1, %s133
      $region28: #{dual_graph_relation_forward.25} parent=23 // pred_fallthru
        _
    $region24: #{dual_graph_relation_forward.25} parent=5 // pred_fallthru
      _
    %p135 = scmp.le.s32.totalorder 1, %s9
    %p136 = scmp.lt.s32.totalorder %s9, 3
    %p137 = pnand %p135, %p136
    %p138 = pneg %p137
    // Predicated region
    $region29: #{dual_graph_relation_forward.25} parent=5 // pred_check
      _
    $region30: #{dual_graph_relation_forward.25} parent=5 // pred_check_branch
      %140 = sbr.rel (%p137) target = $region32
    $region31: #{dual_graph_relation_forward.25} parent=5 // pred_region
      %s141 = ssub.s32 %s9, 1
      %p142 = pneg %p30
      %p143 = pneg %p27
      %p144 = scmp.lt.s32.totalorder %s14, 1
      %s145 = scalar_select %p144, %s14, 1
      %s146 = smul.addr %s145, 8
      %s147 = scalar_lea.vmem %s1, %s146
      %p148 = pneg %p56
      %p149 = pneg %p53
      %p150 = pneg %p77
      %p151 = pneg %p74
      %p152 = pneg %p103
      %p153 = pneg %p100
      %p154 = scmp.lt.s32.totalorder %s14, 1
      %s155 = scalar_select %p154, %s14, 1
      %s156 = smul.addr %s155, 8
      %s157 = scalar_lea.vmem %s3, %s156
      %p158 = scmp.lt.s32.totalorder %s14, 1
      %s159 = scalar_select %p158, %s14, 1
      %s160 = smul.addr %s159, 8
      %s161 = scalar_lea.vmem %s1, %s160
      %p162 = scmp.lt.s32.totalorder %s14, 1
      %s163 = scalar_select %p162, %s14, 1
      %s164 = smul.addr %s163, 8
      %s165 = scalar_lea.vmem %s3, %s164
      %v166 = vld [vmem:[%s0] sm:$0xff]
      %v167 = vld [vmem:[%s161] sm:$0xff]
      %v168 = vld [vmem:[%s2] sm:$0x1]
      %v170 = vlaneseq
      %v171 = vshrl.u32 %v170, 7
      %v172 = vsub.s32 0, %v171
      %v173 = vrot.slane %v168, %v172
      %vm175 = vcmask 64512
      %v177 = vsel %vm175, %v166, 0
      %179 = vmatprep.subr.mxu0 0.0
      %180 = vmatpush1.msra.mxu0 0.0
      %181 = vmatprep.subr.mxu0 0.0
      %182 = vmatpush1.msra.mxu0 0.0
      %183 = vmatprep.subr.mxu0 0.0
      %184 = vmatpush1.msra.mxu0 0.0
      %185 = vmatprep.subr.mxu0 0.0
      %186 = vmatpush1.msra.mxu0 0.0
      %187 = vmatprep.subr.mxu0 0.0
      %188 = vmatpush1.msra.mxu0 0.0
      %189 = vmatprep.subr.mxu0 0.0
      %190 = vmatpush1.msra.mxu0 0.0
      %191 = vmatprep.subr.mxu0 0.0
      %192 = vmatpush1.msra.mxu0 0.0
      %193 = vmatprep.subr.mxu0 0.0
      %194 = vmatpush1.msra.mxu0 0.0
      %195 = vmatprep.subr.mxu0 0.0
      %196 = vmatpush1.msra.mxu0 0.0
      %197 = vmatprep.subr.mxu0 0.0
      %198 = vmatpush1.msra.mxu0 0.0
      %199 = vmatprep.subr.mxu0 0.0
      %200 = vmatpush1.msra.mxu0 0.0
      %201 = vmatprep.subr.mxu0 0.0
      %202 = vmatpush1.msra.mxu0 0.0
      %203 = vmatprep.subr.mxu0 0.0
      %204 = vmatpush1.msra.mxu0 0.0
      %205 = vmatprep.subr.mxu0 0.0
      %206 = vmatpush1.msra.mxu0 0.0
      %207 = vmatprep.subr.mxu0 0.0
      %208 = vmatpush1.msra.mxu0 0.0
      %209 = vmatprep.subr.mxu0 0.0
      %210 = vmatpush1.msra.mxu0 %v167
      %211 = vmatprep.subr.mxu0 0.0
      %212 = vmatpush2.msra.mxu0 0.0
      %213 = vmatprep.subr.mxu0 0.0
      %214 = vmatpush2.msra.mxu0 0.0
      %215 = vmatprep.subr.mxu0 0.0
      %216 = vmatpush2.msra.mxu0 0.0
      %217 = vmatprep.subr.mxu0 0.0
      %218 = vmatpush2.msra.mxu0 0.0
      %219 = vmatprep.subr.mxu0 0.0
      %220 = vmatpush2.msra.mxu0 0.0
      %221 = vmatprep.subr.mxu0 0.0
      %222 = vmatpush2.msra.mxu0 0.0
      %223 = vmatprep.subr.mxu0 0.0
      %224 = vmatpush2.msra.mxu0 0.0
      %225 = vmatprep.subr.mxu0 0.0
      %226 = vmatpush2.msra.mxu0 0.0
      %227 = vmatprep.subr.mxu0 0.0
      %228 = vmatpush2.msra.mxu0 0.0
      %229 = vmatprep.subr.mxu0 0.0
      %230 = vmatpush2.msra.mxu0 0.0
      %231 = vmatprep.subr.mxu0 0.0
      %232 = vmatpush2.msra.mxu0 0.0
      %233 = vmatprep.subr.mxu0 0.0
      %234 = vmatpush2.msra.mxu0 0.0
      %235 = vmatprep.subr.mxu0 0.0
      %236 = vmatpush2.msra.mxu0 0.0
      %237 = vmatprep.subr.mxu0 0.0
      %238 = vmatpush2.msra.mxu0 0.0
      %239 = vmatprep.subr.mxu0 0.0
      %240 = vmatpush2.msra.mxu0 0.0
      %241 = vmatprep.subr.mxu0 0.0
      %242 = vmatpush2.msra.mxu0 0.0
      %243 = vmatprep.mubr.f32.mxu0 0.0
      %244 = vmatmul.mubr.f32.gmra.mxu0 %v177
      %v245 = vpop.f32.mrf.mxu0
      %v246 = vadd.f32 %v173, %v245
      %v247 = vpop.f32.mrf.mxu0
      %248 = vdwg.mxu0
      %v249 = vmax.f32 %v246, 0.0
      %vm250 = vcmask 261120
      %251 = vst.msk [vmem:[%s165] sm:$0xff] %vm250, %v249
      %p252 = scmp.lt.s32.totalorder %s14, 1
      %s253 = scalar_select %p252, %s14, 1
      %s254 = smul.addr %s253, 8
      %s255 = scalar_lea.vmem %s3, %s254
      // Predicated region
      $region33: #{dual_graph_relation_forward.25} parent=31 // pred_check
        %p256 = pneg %p100
      $region34: #{dual_graph_relation_forward.25} parent=31 // pred_check_branch
        %258 = sbr.rel (%p256) target = $region36
      $region35: #{dual_graph_relation_forward.25} parent=31 // pred_region
        _
      $region36: #{dual_graph_relation_forward.25} parent=31 // pred_fallthru
        _
    $region32: #{dual_graph_relation_forward.25} parent=5 // pred_fallthru
      _
    %p259 = scmp.le.s32.totalorder 2, %s9
    // Predicated region
    $region37: #{dual_graph_relation_forward.25} parent=5 // pred_check
      %p260 = pneg %p259
    $region38: #{dual_graph_relation_forward.25} parent=5 // pred_check_branch
      %262 = sbr.rel (%p260) target = $region40
    $region39: #{dual_graph_relation_forward.25} parent=5 // pred_region
      %s263 = ssub.s32 %s9, 2
      // Predicated region
      $region41: #{dual_graph_relation_forward.25} parent=39 // pred_check
        %p264 = pneg %p106
      $region42: #{dual_graph_relation_forward.25} parent=39 // pred_check_branch
        %266 = sbr.rel (%p264) target = $region44
      $region43: #{dual_graph_relation_forward.25} parent=39 // pred_region
        %p267 = scmp.lt.s32.totalorder %s15, 1
        %s268 = scalar_select %p267, %s15, 1
        %s269 = smul.addr %s268, 8
        %s270 = scalar_lea.vmem %s3, %s269
      $region44: #{dual_graph_relation_forward.25} parent=39 // pred_fallthru
        _
    $region40: #{dual_graph_relation_forward.25} parent=5 // pred_fallthru
      _
  $region6: #{dual_graph_relation_forward.25} parent=0 // loop_footer
    %s13 = sadd.s32 1, %s9
  $region7: #{dual_graph_relation_forward.25} parent=0 // loop_footer_branch
    %8 = sbr.rel target = $region3
  $region8: #{dual_graph_relation_forward.25} parent=0 // loop_exit
    _

// kernel: dual_graph_relation_forward.37
$region0: #{dual_graph_relation_forward.37}
  #allocation0 [shape = 'u32[]', space=smem, size = 0x4, offset = 0x4, fixed_abs, tag = 'smem constant byte address 0x4 - core index']
  #allocation1 [shape = 'u32[144,128]{1,0:T(1,128)}', space=vmem, size = 0x12000, scoped, tag = 'internal scratch']
  %s0 = inlined_call_operand.vmem [shape: f32[64,2,8], index: 0, kind: input, shape index: {}]
  %s1 = inlined_call_operand.vmem [shape: f32[64,2,8], index: 1, kind: input, shape index: {}]
  %s2 = inlined_call_operand.vmem [shape: f32[64,2,8], index: 2, kind: input, shape index: {}]
  %s3 = inlined_call_operand.vmem [shape: f32[64,2,8], index: 3, kind: output, shape index: {}]
  %s4 = sld [smem:[#allocation0]]
  $region45: #{dual_graph_relation_forward.37} parent=0
    _
  %s6 = ssub.s32 1, %s4
  %s7 = scalar_select 0, %s6, %s4
  loop: start=0, step=1, limit=66
  $region2: #{dual_graph_relation_forward.37} parent=0 // loop_pre_header
    _
  $region3: #{dual_graph_relation_forward.37} parent=0 // loop_header
    %s9 = sphi 0, %s13
    %p10 = scmp.ge.s32.totalorder %s9, 66
    %s19 = sphi 0, %s21
    %s22 = sphi 0, %s19
    %s23 = sphi 0, %s22
    %s39 = sphi 0, %s23
    %s45 = sphi 0, %s47
    %s48 = sphi 0, %s45
    %s49 = sphi 0, %s48
    %s65 = sphi 0, %s49
    %s71 = sphi 0, %s73
    %s74 = sphi 0, %s71
    %s75 = sphi 0, %s74
    %s91 = sphi 0, %s75
    %s97 = sphi 0, %s99
    %s100 = sphi 0, %s97
    %s101 = sphi 0, %s100
    %s117 = sphi 0, %s101
  $region4: #{dual_graph_relation_forward.37} parent=0 // loop_header_branch
    %12 = sbr.rel (%p10) target = $region8
  $region5: #{dual_graph_relation_forward.37} parent=0 // loop_body
    %s14 = ssub.s32 %s9, 1
    %s15 = ssub.s32 %s9, 2
    %s16 = sadd.s32 %s9, 1
    %s17 = ssub.s32 %s9, %s16
    %p18 = scmp.eq.s32.totalorder %s17, 0
    %s20 = sadd.s32 %s19, 1
    %s21 = scalar_select %p18, %s19, %s20
    %p24 = pneg %p18
    %p25 = scmp.eq.s32.totalorder %s9, 63
    %p26 = por %p24, %p25
    %p27 = scmp.ne.s32.totalorder %s19, %s22
    %p28 = scmp.eq.s32.totalorder %s9, 0
    %p29 = por %p27, %p28
    %p30 = scmp.ne.s32.totalorder %s19, %s22
    %p31 = scmp.eq.s32.totalorder %s14, 63
    %p32 = por %p30, %p31
    %p33 = scmp.ne.s32.totalorder %s22, %s23
    %p34 = scmp.eq.s32.totalorder %s14, 0
    %p35 = por %p33, %p34
    %p36 = scmp.ne.s32.totalorder %s22, %s23
    %p37 = scmp.eq.s32.totalorder %s15, 63
    %p38 = por %p36, %p37
    %p40 = scmp.ne.s32.totalorder %s23, %s39
    %p41 = scmp.eq.s32.totalorder %s15, 0
    %p42 = por %p40, %p41
    %s43 = ssub.s32 %s9, %s16
    %p44 = scmp.eq.s32.totalorder %s43, 0
    %s46 = sadd.s32 %s45, 1
    %s47 = scalar_select %p44, %s45, %s46
    %p50 = pneg %p44
    %p51 = scmp.eq.s32.totalorder %s9, 63
    %p52 = por %p50, %p51
    %p53 = scmp.ne.s32.totalorder %s45, %s48
    %p54 = scmp.eq.s32.totalorder %s9, 0
    %p55 = por %p53, %p54
    %p56 = scmp.ne.s32.totalorder %s45, %s48
    %p57 = scmp.eq.s32.totalorder %s14, 63
    %p58 = por %p56, %p57
    %p59 = scmp.ne.s32.totalorder %s48, %s49
    %p60 = scmp.eq.s32.totalorder %s14, 0
    %p61 = por %p59, %p60
    %p62 = scmp.ne.s32.totalorder %s48, %s49
    %p63 = scmp.eq.s32.totalorder %s15, 63
    %p64 = por %p62, %p63
    %p66 = scmp.ne.s32.totalorder %s49, %s65
    %p67 = scmp.eq.s32.totalorder %s15, 0
    %p68 = por %p66, %p67
    %s69 = ssub.s32 %s9, %s16
    %p70 = scmp.eq.s32.totalorder %s69, 0
    %s72 = sadd.s32 %s71, 1
    %s73 = scalar_select %p70, %s71, %s72
    %p76 = pneg %p70
    %p77 = scmp.eq.s32.totalorder %s9, 63
    %p78 = por %p76, %p77
    %p79 = scmp.ne.s32.totalorder %s71, %s74
    %p80 = scmp.eq.s32.totalorder %s9, 0
    %p81 = por %p79, %p80
    %p82 = scmp.ne.s32.totalorder %s71, %s74
    %p83 = scmp.eq.s32.totalorder %s14, 63
    %p84 = por %p82, %p83
    %p85 = scmp.ne.s32.totalorder %s74, %s75
    %p86 = scmp.eq.s32.totalorder %s14, 0
    %p87 = por %p85, %p86
    %p88 = scmp.ne.s32.totalorder %s74, %s75
    %p89 = scmp.eq.s32.totalorder %s15, 63
    %p90 = por %p88, %p89
    %p92 = scmp.ne.s32.totalorder %s75, %s91
    %p93 = scmp.eq.s32.totalorder %s15, 0
    %p94 = por %p92, %p93
    %s95 = ssub.s32 %s9, %s16
    %p96 = scmp.eq.s32.totalorder %s95, 0
    %s98 = sadd.s32 %s97, 1
    %s99 = scalar_select %p96, %s97, %s98
    %p102 = pneg %p96
    %p103 = scmp.eq.s32.totalorder %s9, 63
    %p104 = por %p102, %p103
    %p105 = scmp.ne.s32.totalorder %s97, %s100
    %p106 = scmp.eq.s32.totalorder %s9, 0
    %p107 = por %p105, %p106
    %p108 = scmp.ne.s32.totalorder %s97, %s100
    %p109 = scmp.eq.s32.totalorder %s14, 63
    %p110 = por %p108, %p109
    %p111 = scmp.ne.s32.totalorder %s100, %s101
    %p112 = scmp.eq.s32.totalorder %s14, 0
    %p113 = por %p111, %p112
    %p114 = scmp.ne.s32.totalorder %s100, %s101
    %p115 = scmp.eq.s32.totalorder %s15, 63
    %p116 = por %p114, %p115
    %p118 = scmp.ne.s32.totalorder %s101, %s117
    %p119 = scmp.eq.s32.totalorder %s15, 0
    %p120 = por %p118, %p119
    %p121 = scmp.le.s32.totalorder 1, %s9
    %p122 = scmp.lt.s32.totalorder %s9, 65
    %p123 = pnand %p121, %p122
    %p124 = pneg %p123
    // Predicated region
    $region9: #{dual_graph_relation_forward.37} parent=5 // pred_check
      _
    $region10: #{dual_graph_relation_forward.37} parent=5 // pred_check_branch
      %126 = sbr.rel (%p123) target = $region12
    $region11: #{dual_graph_relation_forward.37} parent=5 // pred_region
      %s127 = ssub.s32 %s9, 1
    $region12: #{dual_graph_relation_forward.37} parent=5 // pred_fallthru
      _
    %p128 = scmp.lt.s32.totalorder %s9, 64
    // Predicated region
    $region13: #{dual_graph_relation_forward.37} parent=5 // pred_check
      %p129 = pneg %p128
    $region14: #{dual_graph_relation_forward.37} parent=5 // pred_check_branch
      %131 = sbr.rel (%p129) target = $region16
    $region15: #{dual_graph_relation_forward.37} parent=5 // pred_region
      // Predicated region
      $region17: #{dual_graph_relation_forward.37} parent=15 // pred_check
        %p132 = pneg %p29
      $region18: #{dual_graph_relation_forward.37} parent=15 // pred_check_branch
        %134 = sbr.rel (%p132) target = $region20
      $region19: #{dual_graph_relation_forward.37} parent=15 // pred_region
        %p135 = scmp.lt.s32.totalorder %s9, 63
        %s136 = scalar_select %p135, %s9, 63
        %s137 = smul.addr %s136, 2
        %s138 = scalar_lea.vmem %s0, %s137
      $region20: #{dual_graph_relation_forward.37} parent=15 // pred_fallthru
        _
      // Predicated region
      $region21: #{dual_graph_relation_forward.37} parent=15 // pred_check
        %p139 = pneg %p55
      $region22: #{dual_graph_relation_forward.37} parent=15 // pred_check_branch
        %141 = sbr.rel (%p139) target = $region24
      $region23: #{dual_graph_relation_forward.37} parent=15 // pred_region
        %p142 = scmp.lt.s32.totalorder %s9, 63
        %s143 = scalar_select %p142, %s9, 63
        %s144 = smul.addr %s143, 2
        %s145 = scalar_lea.vmem %s1, %s144
      $region24: #{dual_graph_relation_forward.37} parent=15 // pred_fallthru
        _
      // Predicated region
      $region25: #{dual_graph_relation_forward.37} parent=15 // pred_check
        %p146 = pneg %p81
      $region26: #{dual_graph_relation_forward.37} parent=15 // pred_check_branch
        %148 = sbr.rel (%p146) target = $region28
      $region27: #{dual_graph_relation_forward.37} parent=15 // pred_region
        %p149 = scmp.lt.s32.totalorder %s9, 63
        %s150 = scalar_select %p149, %s9, 63
        %s151 = smul.addr %s150, 2
        %s152 = scalar_lea.vmem %s2, %s151
      $region28: #{dual_graph_relation_forward.37} parent=15 // pred_fallthru
        _
    $region16: #{dual_graph_relation_forward.37} parent=5 // pred_fallthru
      _
    %p153 = scmp.le.s32.totalorder 1, %s9
    %p154 = scmp.lt.s32.totalorder %s9, 65
    %p155 = pnand %p153, %p154
    %p156 = pneg %p155
    // Predicated region
    $region29: #{dual_graph_relation_forward.37} parent=5 // pred_check
      _
    $region30: #{dual_graph_relation_forward.37} parent=5 // pred_check_branch
      %158 = sbr.rel (%p155) target = $region32
    $region31: #{dual_graph_relation_forward.37} parent=5 // pred_region
      %s159 = ssub.s32 %s9, 1
      %p160 = scmp.lt.s32.totalorder %s14, 63
      %s161 = scalar_select %p160, %s14, 63
      %s162 = smul.addr %s161, 2
      %s163 = scalar_lea.vmem %s0, %s162
      %p164 = pneg %p35
      %p165 = pneg %p32
      %p166 = scmp.lt.s32.totalorder %s14, 63
      %s167 = scalar_select %p166, %s14, 63
      %s168 = smul.addr %s167, 2
      %s169 = scalar_lea.vmem %s1, %s168
      %p170 = pneg %p61
      %p171 = pneg %p58
      %p172 = scmp.lt.s32.totalorder %s14, 63
      %s173 = scalar_select %p172, %s14, 63
      %s174 = smul.addr %s173, 2
      %s175 = scalar_lea.vmem %s2, %s174
      %p176 = pneg %p87
      %p177 = pneg %p84
      %p178 = pneg %p113
      %p179 = pneg %p110
      %p180 = scmp.lt.s32.totalorder %s14, 63
      %s181 = scalar_select %p180, %s14, 63
      %s182 = smul.addr %s181, 2
      %s183 = scalar_lea.vmem %s3, %s182
      %p184 = scmp.lt.s32.totalorder %s14, 63
      %s185 = scalar_select %p184, %s14, 63
      %s186 = smul.addr %s185, 2
      %s187 = scalar_lea.vmem %s0, %s186
      %p188 = scmp.lt.s32.totalorder %s14, 63
      %s189 = scalar_select %p188, %s14, 63
      %s190 = smul.addr %s189, 2
      %s191 = scalar_lea.vmem %s1, %s190
      %p192 = scmp.lt.s32.totalorder %s14, 63
      %s193 = scalar_select %p192, %s14, 63
      %s194 = smul.addr %s193, 2
      %s195 = scalar_lea.vmem %s2, %s194
      %p196 = scmp.lt.s32.totalorder %s14, 63
      %s197 = scalar_select %p196, %s14, 63
      %s198 = smul.addr %s197, 2
      %s199 = scalar_lea.vmem %s3, %s198
      %v200 = vld [vmem:[%s187] sm:$0x3]
      %v201 = vmul.f32 %v200, 0.35355338
      %v202 = vld [vmem:[%s191] sm:$0x3]
      %v203 = vld [vmem:[%s195] sm:$0x3]
      %vm204 = vcmask 64512
      %v206 = vsel %vm204, %v201, 0
      %v209 = vsel %vm204, %v202, 0
      %211 = vmatprep.subr.mxu0 0.0
      %212 = vmatpush1.xpose.msra.mxu0 0.0
      %213 = vmatprep.subr.mxu0 0.0
      %214 = vmatpush1.xpose.msra.mxu0 0.0
      %215 = vmatprep.subr.mxu0 0.0
      %216 = vmatpush1.xpose.msra.mxu0 0.0
      %217 = vmatprep.subr.mxu0 0.0
      %218 = vmatpush1.xpose.msra.mxu0 0.0
      %219 = vmatprep.subr.mxu0 0.0
      %220 = vmatpush1.xpose.msra.mxu0 0.0
      %221 = vmatprep.subr.mxu0 0.0
      %222 = vmatpush1.xpose.msra.mxu0 0.0
      %223 = vmatprep.subr.mxu0 0.0
      %224 = vmatpush1.xpose.msra.mxu0 0.0
      %225 = vmatprep.subr.mxu0 0.0
      %226 = vmatpush1.xpose.msra.mxu0 0.0
      %227 = vmatprep.subr.mxu0 0.0
      %228 = vmatpush1.xpose.msra.mxu0 0.0
      %229 = vmatprep.subr.mxu0 0.0
      %230 = vmatpush1.xpose.msra.mxu0 0.0
      %231 = vmatprep.subr.mxu0 0.0
      %232 = vmatpush1.xpose.msra.mxu0 0.0
      %233 = vmatprep.subr.mxu0 0.0
      %234 = vmatpush1.xpose.msra.mxu0 0.0
      %235 = vmatprep.subr.mxu0 0.0
      %236 = vmatpush1.xpose.msra.mxu0 0.0
      %237 = vmatprep.subr.mxu0 0.0
      %238 = vmatpush1.xpose.msra.mxu0 0.0
      %239 = vmatprep.subr.mxu0 0.0
      %240 = vmatpush1.xpose.msra.mxu0 0.0
      %241 = vmatprep.subr.mxu0 0.0
      %242 = vmatpush1.xpose.msra.mxu0 %v209
      %243 = vmatprep.subr.mxu0 0.0
      %244 = vmatpush2.xpose.msra.mxu0 0.0
      %245 = vmatprep.subr.mxu0 0.0
      %246 = vmatpush2.xpose.msra.mxu0 0.0
      %247 = vmatprep.subr.mxu0 0.0
      %248 = vmatpush2.xpose.msra.mxu0 0.0
      %249 = vmatprep.subr.mxu0 0.0
      %250 = vmatpush2.xpose.msra.mxu0 0.0
      %251 = vmatprep.subr.mxu0 0.0
      %252 = vmatpush2.xpose.msra.mxu0 0.0
      %253 = vmatprep.subr.mxu0 0.0
      %254 = vmatpush2.xpose.msra.mxu0 0.0
      %255 = vmatprep.subr.mxu0 0.0
      %256 = vmatpush2.xpose.msra.mxu0 0.0
      %257 = vmatprep.subr.mxu0 0.0
      %258 = vmatpush2.xpose.msra.mxu0 0.0
      %259 = vmatprep.subr.mxu0 0.0
      %260 = vmatpush2.xpose.msra.mxu0 0.0
      %261 = vmatprep.subr.mxu0 0.0
      %262 = vmatpush2.xpose.msra.mxu0 0.0
      %263 = vmatprep.subr.mxu0 0.0
      %264 = vmatpush2.xpose.msra.mxu0 0.0
      %265 = vmatprep.subr.mxu0 0.0
      %266 = vmatpush2.xpose.msra.mxu0 0.0
      %267 = vmatprep.subr.mxu0 0.0
      %268 = vmatpush2.xpose.msra.mxu0 0.0
      %269 = vmatprep.subr.mxu0 0.0
      %270 = vmatpush2.xpose.msra.mxu0 0.0
      %271 = vmatprep.subr.mxu0 0.0
      %272 = vmatpush2.xpose.msra.mxu0 0.0
      %273 = vmatprep.subr.mxu0 0.0
      %274 = vmatpush2.xpose.msra.mxu0 0.0
      %275 = vmatprep.mubr.f32.mxu0 0.0
      %276 = vmatmul.mubr.f32.gmra.mxu0 %v206
      %v277 = vpop.f32.mrf.mxu0
      %v278 = vadd.f32 0.0, %v277
      %v279 = vpop.f32.mrf.mxu0
      %280 = vdwg.mxu0
      %vm281 = vcmask 9216
      %v282 = vsel %vm281, %v278, -inf
      %283 = vmax.xlane.f32.xlu0 %v282
      %v284 = vpop.xlane.xlu0 %283
      %v285 = vsub.f32 %v278, %v284
      %v286 = vmul.f32 %v285, 1.442695
      %v287 = vpow.pop %v286
      %v288 = vsel %vm281, %v287, 0.0
      %289 = vadd.xlane.f32.xlu0 %v288
      %v290 = vpop.xlane.xlu0 %289
      %v291 = vrcp.pop %v290
      %v292 = vmul.f32 %v287, %v291
      %vm293 = vcmask 15360
      %v295 = vsel %vm293, %v292, 0
      %vm297 = vcmask 1041408
      %v299 = vsel %vm297, %v203, 0
      %301 = vmatprep.subr.mxu0 0.0
      %302 = vmatpush1.msra.mxu0 0.0
      %303 = vmatprep.subr.mxu0 0.0
      %304 = vmatpush1.msra.mxu0 0.0
      %305 = vmatprep.subr.mxu0 0.0
      %306 = vmatpush1.msra.mxu0 0.0
      %307 = vmatprep.subr.mxu0 0.0
      %308 = vmatpush1.msra.mxu0 0.0
      %309 = vmatprep.subr.mxu0 0.0
      %310 = vmatpush1.msra.mxu0 0.0
      %311 = vmatprep.subr.mxu0 0.0
      %312 = vmatpush1.msra.mxu0 0.0
      %313 = vmatprep.subr.mxu0 0.0
      %314 = vmatpush1.msra.mxu0 0.0
      %315 = vmatprep.subr.mxu0 0.0
      %316 = vmatpush1.msra.mxu0 0.0
      %317 = vmatprep.subr.mxu0 0.0
      %318 = vmatpush1.msra.mxu0 0.0
      %319 = vmatprep.subr.mxu0 0.0
      %320 = vmatpush1.msra.mxu0 0.0
      %321 = vmatprep.subr.mxu0 0.0
      %322 = vmatpush1.msra.mxu0 0.0
      %323 = vmatprep.subr.mxu0 0.0
      %324 = vmatpush1.msra.mxu0 0.0
      %325 = vmatprep.subr.mxu0 0.0
      %326 = vmatpush1.msra.mxu0 0.0
      %327 = vmatprep.subr.mxu0 0.0
      %328 = vmatpush1.msra.mxu0 0.0
      %329 = vmatprep.subr.mxu0 0.0
      %330 = vmatpush1.msra.mxu0 0.0
      %331 = vmatprep.subr.mxu0 0.0
      %332 = vmatpush1.msra.mxu0 %v299
      %333 = vmatprep.subr.mxu0 0.0
      %334 = vmatpush2.msra.mxu0 0.0
      %335 = vmatprep.subr.mxu0 0.0
      %336 = vmatpush2.msra.mxu0 0.0
      %337 = vmatprep.subr.mxu0 0.0
      %338 = vmatpush2.msra.mxu0 0.0
      %339 = vmatprep.subr.mxu0 0.0
      %340 = vmatpush2.msra.mxu0 0.0
      %341 = vmatprep.subr.mxu0 0.0
      %342 = vmatpush2.msra.mxu0 0.0
      %343 = vmatprep.subr.mxu0 0.0
      %344 = vmatpush2.msra.mxu0 0.0
      %345 = vmatprep.subr.mxu0 0.0
      %346 = vmatpush2.msra.mxu0 0.0
      %347 = vmatprep.subr.mxu0 0.0
      %348 = vmatpush2.msra.mxu0 0.0
      %349 = vmatprep.subr.mxu0 0.0
      %350 = vmatpush2.msra.mxu0 0.0
      %351 = vmatprep.subr.mxu0 0.0
      %352 = vmatpush2.msra.mxu0 0.0
      %353 = vmatprep.subr.mxu0 0.0
      %354 = vmatpush2.msra.mxu0 0.0
      %355 = vmatprep.subr.mxu0 0.0
      %356 = vmatpush2.msra.mxu0 0.0
      %357 = vmatprep.subr.mxu0 0.0
      %358 = vmatpush2.msra.mxu0 0.0
      %359 = vmatprep.subr.mxu0 0.0
      %360 = vmatpush2.msra.mxu0 0.0
      %361 = vmatprep.subr.mxu0 0.0
      %362 = vmatpush2.msra.mxu0 0.0
      %363 = vmatprep.subr.mxu0 0.0
      %364 = vmatpush2.msra.mxu0 0.0
      %365 = vmatprep.mubr.f32.mxu0 0.0
      %366 = vmatmul.mubr.f32.gmra.mxu0 %v295
      %v367 = vpop.f32.mrf.mxu0
      %v368 = vadd.f32 0.0, %v367
      %v369 = vpop.f32.mrf.mxu0
      %370 = vdwg.mxu0
      %vm371 = vcmask 58368
      %372 = vst.msk [vmem:[%s199] sm:$0x3] %vm371, %v368
      %p373 = scmp.lt.s32.totalorder %s14, 63
      %s374 = scalar_select %p373, %s14, 63
      %s375 = smul.addr %s374, 2
      %s376 = scalar_lea.vmem %s3, %s375
      // Predicated region
      $region33: #{dual_graph_relation_forward.37} parent=31 // pred_check
        %p377 = pneg %p110
      $region34: #{dual_graph_relation_forward.37} parent=31 // pred_check_branch
        %379 = sbr.rel (%p377) target = $region36
      $region35: #{dual_graph_relation_forward.37} parent=31 // pred_region
        _
      $region36: #{dual_graph_relation_forward.37} parent=31 // pred_fallthru
        _
    $region32: #{dual_graph_relation_forward.37} parent=5 // pred_fallthru
      _
    %p380 = scmp.le.s32.totalorder 2, %s9
    // Predicated region
    $region37: #{dual_graph_relation_forward.37} parent=5 // pred_check
      %p381 = pneg %p380
    $region38: #{dual_graph_relation_forward.37} parent=5 // pred_check_branch
      %383 = sbr.rel (%p381) target = $region40
    $region39: #{dual_graph_relation_forward.37} parent=5 // pred_region
      %s384 = ssub.s32 %s9, 2
      // Predicated region
      $region41: #{dual_graph_relation_forward.37} parent=39 // pred_check
        %p385 = pneg %p116
      $region42: #{dual_graph_relation_forward.37} parent=39 // pred_check_branch
        %387 = sbr.rel (%p385) target = $region44
      $region43: #{dual_graph_relation_forward.37} parent=39 // pred_region
        %p388 = scmp.lt.s32.totalorder %s15, 63
        %s389 = scalar_select %p388, %s15, 63
        %s390 = smul.addr %s389, 2
        %s391 = scalar_lea.vmem %s3, %s390
      $region44: #{dual_graph_relation_forward.37} parent=39 // pred_fallthru
        _
    $region40: #{dual_graph_relation_forward.37} parent=5 // pred_fallthru
      _
  $region6: #{dual_graph_relation_forward.37} parent=0 // loop_footer
    %s13 = sadd.s32 1, %s9
  $region7: #{dual_graph_relation_forward.37} parent=0 // loop_footer_branch
    %8 = sbr.rel target = $region3
  $region8: #{dual_graph_relation_forward.37} parent=0 // loop_exit
    _

// kernel: dual_graph_relation_forward.39
$region0: #{dual_graph_relation_forward.39}
  #allocation0 [shape = 'u32[]', space=smem, size = 0x4, offset = 0x4, fixed_abs, tag = 'smem constant byte address 0x4 - core index']
  #allocation1 [shape = 'u32[144,128]{1,0:T(1,128)}', space=vmem, size = 0x12000, scoped, tag = 'internal scratch']
  #allocation2 [shape = 'f32[8,128]{1,0:T(8,128)}', space=vmem, size = 0x1000, scoped, tag = 'scratch operand']
  %s0 = inlined_call_operand.vmem [shape: f32[8,512], index: 0, kind: input, shape index: {}]
  %s1 = inlined_call_operand.vmem [shape: f32[512,128], index: 1, kind: input, shape index: {}]
  %s2 = inlined_call_operand.vmem [shape: f32[1,128], index: 2, kind: input, shape index: {}]
  %s3 = inlined_call_operand.vmem [shape: f32[8,128], index: 3, kind: output, shape index: {}]
  %s4 = sld [smem:[#allocation0]]
  $region30: #{dual_graph_relation_forward.39} parent=0
    _
  %s6 = ssub.s32 1, %s4
  %s7 = scalar_select 0, %s6, %s4
  // Predicated region
  $region2: #{dual_graph_relation_forward.39} parent=0 // pred_check
    _
  $region3: #{dual_graph_relation_forward.39} parent=0 // pred_check_branch
    %9 = sbr.rel (0) target = $region5
  $region4: #{dual_graph_relation_forward.39} parent=0 // pred_region
    _
  $region5: #{dual_graph_relation_forward.39} parent=0 // pred_fallthru
    _
  // Predicated region
  $region6: #{dual_graph_relation_forward.39} parent=0 // pred_check
    _
  $region7: #{dual_graph_relation_forward.39} parent=0 // pred_check_branch
    %11 = sbr.rel (0) target = $region9
  $region8: #{dual_graph_relation_forward.39} parent=0 // pred_region
    _
  $region9: #{dual_graph_relation_forward.39} parent=0 // pred_fallthru
    _
  // Predicated region
  $region10: #{dual_graph_relation_forward.39} parent=0 // pred_check
    _
  $region11: #{dual_graph_relation_forward.39} parent=0 // pred_check_branch
    %13 = sbr.rel (0) target = $region13
  $region12: #{dual_graph_relation_forward.39} parent=0 // pred_region
    _
  $region13: #{dual_graph_relation_forward.39} parent=0 // pred_fallthru
    _
  %p14 = scmp.eq.s32.totalorder 0, 0
  // Predicated region
  $region14: #{dual_graph_relation_forward.39} parent=0 // pred_check
    %p15 = pneg %p14
  $region15: #{dual_graph_relation_forward.39} parent=0 // pred_check_branch
    %17 = sbr.rel (%p15) target = $region17
  $region16: #{dual_graph_relation_forward.39} parent=0 // pred_region
    %18 = vst [vmem:[#allocation2] sm:$0xff] 0.0
  $region17: #{dual_graph_relation_forward.39} parent=0 // pred_fallthru
    _
  %v19 = vld [vmem:[#allocation2] sm:$0xff]
  %v20 = vld [vmem:[%s0] sm:$0xff]
  %v21 = vld [vmem:[%s0 + $0x8] sm:$0xff]
  %v22 = vld [vmem:[%s0 + $0x10] sm:$0xff]
  %v23 = vld [vmem:[%s0 + $0x18] sm:$0xff]
  %v24 = vld [vmem:[%s1] sm:$0xff]
  %v25 = vld [vmem:[%s1 + $0x8] sm:$0xff]
  %v26 = vld [vmem:[%s1 + $0x10] sm:$0xff]
  %v27 = vld [vmem:[%s1 + $0x18] sm:$0xff]
  %v28 = vld [vmem:[%s1 + $0x20] sm:$0xff]
  %v29 = vld [vmem:[%s1 + $0x28] sm:$0xff]
  %v30 = vld [vmem:[%s1 + $0x30] sm:$0xff]
  %v31 = vld [vmem:[%s1 + $0x38] sm:$0xff]
  %v32 = vld [vmem:[%s1 + $0x40] sm:$0xff]
  %v33 = vld [vmem:[%s1 + $0x48] sm:$0xff]
  %v34 = vld [vmem:[%s1 + $0x50] sm:$0xff]
  %v35 = vld [vmem:[%s1 + $0x58] sm:$0xff]
  %v36 = vld [vmem:[%s1 + $0x60] sm:$0xff]
  %v37 = vld [vmem:[%s1 + $0x68] sm:$0xff]
  %v38 = vld [vmem:[%s1 + $0x70] sm:$0xff]
  %v39 = vld [vmem:[%s1 + $0x78] sm:$0xff]
  %v40 = vld [vmem:[%s1 + $0x80] sm:$0xff]
  %v41 = vld [vmem:[%s1 + $0x88] sm:$0xff]
  %v42 = vld [vmem:[%s1 + $0x90] sm:$0xff]
  %v43 = vld [vmem:[%s1 + $0x98] sm:$0xff]
  %v44 = vld [vmem:[%s1 + $0xa0] sm:$0xff]
  %v45 = vld [vmem:[%s1 + $0xa8] sm:$0xff]
  %v46 = vld [vmem:[%s1 + $0xb0] sm:$0xff]
  %v47 = vld [vmem:[%s1 + $0xb8] sm:$0xff]
  %v48 = vld [vmem:[%s1 + $0xc0] sm:$0xff]
  %v49 = vld [vmem:[%s1 + $0xc8] sm:$0xff]
  %v50 = vld [vmem:[%s1 + $0xd0] sm:$0xff]
  %v51 = vld [vmem:[%s1 + $0xd8] sm:$0xff]
  %v52 = vld [vmem:[%s1 + $0xe0] sm:$0xff]
  %v53 = vld [vmem:[%s1 + $0xe8] sm:$0xff]
  %v54 = vld [vmem:[%s1 + $0xf0] sm:$0xff]
  %v55 = vld [vmem:[%s1 + $0xf8] sm:$0xff]
  %v56 = vld [vmem:[%s1 + $0x100] sm:$0xff]
  %v57 = vld [vmem:[%s1 + $0x108] sm:$0xff]
  %v58 = vld [vmem:[%s1 + $0x110] sm:$0xff]
  %v59 = vld [vmem:[%s1 + $0x118] sm:$0xff]
  %v60 = vld [vmem:[%s1 + $0x120] sm:$0xff]
  %v61 = vld [vmem:[%s1 + $0x128] sm:$0xff]
  %v62 = vld [vmem:[%s1 + $0x130] sm:$0xff]
  %v63 = vld [vmem:[%s1 + $0x138] sm:$0xff]
  %v64 = vld [vmem:[%s1 + $0x140] sm:$0xff]
  %v65 = vld [vmem:[%s1 + $0x148] sm:$0xff]
  %v66 = vld [vmem:[%s1 + $0x150] sm:$0xff]
  %v67 = vld [vmem:[%s1 + $0x158] sm:$0xff]
  %v68 = vld [vmem:[%s1 + $0x160] sm:$0xff]
  %v69 = vld [vmem:[%s1 + $0x168] sm:$0xff]
  %v70 = vld [vmem:[%s1 + $0x170] sm:$0xff]
  %v71 = vld [vmem:[%s1 + $0x178] sm:$0xff]
  %v72 = vld [vmem:[%s1 + $0x180] sm:$0xff]
  %v73 = vld [vmem:[%s1 + $0x188] sm:$0xff]
  %v74 = vld [vmem:[%s1 + $0x190] sm:$0xff]
  %v75 = vld [vmem:[%s1 + $0x198] sm:$0xff]
  %v76 = vld [vmem:[%s1 + $0x1a0] sm:$0xff]
  %v77 = vld [vmem:[%s1 + $0x1a8] sm:$0xff]
  %v78 = vld [vmem:[%s1 + $0x1b0] sm:$0xff]
  %v79 = vld [vmem:[%s1 + $0x1b8] sm:$0xff]
  %v80 = vld [vmem:[%s1 + $0x1c0] sm:$0xff]
  %v81 = vld [vmem:[%s1 + $0x1c8] sm:$0xff]
  %v82 = vld [vmem:[%s1 + $0x1d0] sm:$0xff]
  %v83 = vld [vmem:[%s1 + $0x1d8] sm:$0xff]
  %v84 = vld [vmem:[%s1 + $0x1e0] sm:$0xff]
  %v85 = vld [vmem:[%s1 + $0x1e8] sm:$0xff]
  %v86 = vld [vmem:[%s1 + $0x1f0] sm:$0xff]
  %v87 = vld [vmem:[%s1 + $0x1f8] sm:$0xff]
  %88 = vmatprep.subr.mxu0 0.0
  %89 = vmatpush1.msra.mxu0 %v39
  %90 = vmatprep.subr.mxu0 0.0
  %91 = vmatpush1.msra.mxu0 %v38
  %92 = vmatprep.subr.mxu0 0.0
  %93 = vmatpush1.msra.mxu0 %v37
  %94 = vmatprep.subr.mxu0 0.0
  %95 = vmatpush1.msra.mxu0 %v36
  %96 = vmatprep.subr.mxu0 0.0
  %97 = vmatpush1.msra.mxu0 %v35
  %98 = vmatprep.subr.mxu0 0.0
  %99 = vmatpush1.msra.mxu0 %v34
  %100 = vmatprep.subr.mxu0 0.0
  %101 = vmatpush1.msra.mxu0 %v33
  %102 = vmatprep.subr.mxu0 0.0
  %103 = vmatpush1.msra.mxu0 %v32
  %104 = vmatprep.subr.mxu0 0.0
  %105 = vmatpush1.msra.mxu0 %v31
  %106 = vmatprep.subr.mxu0 0.0
  %107 = vmatpush1.msra.mxu0 %v30
  %108 = vmatprep.subr.mxu0 0.0
  %109 = vmatpush1.msra.mxu0 %v29
  %110 = vmatprep.subr.mxu0 0.0
  %111 = vmatpush1.msra.mxu0 %v28
  %112 = vmatprep.subr.mxu0 0.0
  %113 = vmatpush1.msra.mxu0 %v27
  %114 = vmatprep.subr.mxu0 0.0
  %115 = vmatpush1.msra.mxu0 %v26
  %116 = vmatprep.subr.mxu0 0.0
  %117 = vmatpush1.msra.mxu0 %v25
  %118 = vmatprep.subr.mxu0 0.0
  %119 = vmatpush1.msra.mxu0 %v24
  %120 = vmatprep.subr.mxu0 0.0
  %121 = vmatpush2.msra.mxu0 %v55
  %122 = vmatprep.subr.mxu0 0.0
  %123 = vmatpush2.msra.mxu0 %v54
  %124 = vmatprep.subr.mxu0 0.0
  %125 = vmatpush2.msra.mxu0 %v53
  %126 = vmatprep.subr.mxu0 0.0
  %127 = vmatpush2.msra.mxu0 %v52
  %128 = vmatprep.subr.mxu0 0.0
  %129 = vmatpush2.msra.mxu0 %v51
  %130 = vmatprep.subr.mxu0 0.0
  %131 = vmatpush2.msra.mxu0 %v50
  %132 = vmatprep.subr.mxu0 0.0
  %133 = vmatpush2.msra.mxu0 %v49
  %134 = vmatprep.subr.mxu0 0.0
  %135 = vmatpush2.msra.mxu0 %v48
  %136 = vmatprep.subr.mxu0 0.0
  %137 = vmatpush2.msra.mxu0 %v47
  %138 = vmatprep.subr.mxu0 0.0
  %139 = vmatpush2.msra.mxu0 %v46
  %140 = vmatprep.subr.mxu0 0.0
  %141 = vmatpush2.msra.mxu0 %v45
  %142 = vmatprep.subr.mxu0 0.0
  %143 = vmatpush2.msra.mxu0 %v44
  %144 = vmatprep.subr.mxu0 0.0
  %145 = vmatpush2.msra.mxu0 %v43
  %146 = vmatprep.subr.mxu0 0.0
  %147 = vmatpush2.msra.mxu0 %v42
  %148 = vmatprep.subr.mxu0 0.0
  %149 = vmatpush2.msra.mxu0 %v41
  %150 = vmatprep.subr.mxu0 0.0
  %151 = vmatpush2.msra.mxu0 %v40
  %152 = vmatprep.mubr.f32.mxu0 %v21
  %153 = vmatmul.mubr.f32.gmra.mxu0 %v20
  %v154 = vpop.f32.mrf.mxu0
  %v155 = vadd.f32 0.0, %v154
  %v156 = vpop.f32.mrf.mxu0
  %157 = vdwg.mxu0
  %158 = vmatprep.subr.mxu0 0.0
  %159 = vmatpush1.msra.mxu0 %v71
  %160 = vmatprep.subr.mxu0 0.0
  %161 = vmatpush1.msra.mxu0 %v70
  %162 = vmatprep.subr.mxu0 0.0
  %163 = vmatpush1.msra.mxu0 %v69
  %164 = vmatprep.subr.mxu0 0.0
  %165 = vmatpush1.msra.mxu0 %v68
  %166 = vmatprep.subr.mxu0 0.0
  %167 = vmatpush1.msra.mxu0 %v67
  %168 = vmatprep.subr.mxu0 0.0
  %169 = vmatpush1.msra.mxu0 %v66
  %170 = vmatprep.subr.mxu0 0.0
  %171 = vmatpush1.msra.mxu0 %v65
  %172 = vmatprep.subr.mxu0 0.0
  %173 = vmatpush1.msra.mxu0 %v64
  %174 = vmatprep.subr.mxu0 0.0
  %175 = vmatpush1.msra.mxu0 %v63
  %176 = vmatprep.subr.mxu0 0.0
  %177 = vmatpush1.msra.mxu0 %v62
  %178 = vmatprep.subr.mxu0 0.0
  %179 = vmatpush1.msra.mxu0 %v61
  %180 = vmatprep.subr.mxu0 0.0
  %181 = vmatpush1.msra.mxu0 %v60
  %182 = vmatprep.subr.mxu0 0.0
  %183 = vmatpush1.msra.mxu0 %v59
  %184 = vmatprep.subr.mxu0 0.0
  %185 = vmatpush1.msra.mxu0 %v58
  %186 = vmatprep.subr.mxu0 0.0
  %187 = vmatpush1.msra.mxu0 %v57
  %188 = vmatprep.subr.mxu0 0.0
  %189 = vmatpush1.msra.mxu0 %v56
  %190 = vmatprep.subr.mxu0 0.0
  %191 = vmatpush2.msra.mxu0 %v87
  %192 = vmatprep.subr.mxu0 0.0
  %193 = vmatpush2.msra.mxu0 %v86
  %194 = vmatprep.subr.mxu0 0.0
  %195 = vmatpush2.msra.mxu0 %v85
  %196 = vmatprep.subr.mxu0 0.0
  %197 = vmatpush2.msra.mxu0 %v84
  %198 = vmatprep.subr.mxu0 0.0
  %199 = vmatpush2.msra.mxu0 %v83
  %200 = vmatprep.subr.mxu0 0.0
  %201 = vmatpush2.msra.mxu0 %v82
  %202 = vmatprep.subr.mxu0 0.0
  %203 = vmatpush2.msra.mxu0 %v81
  %204 = vmatprep.subr.mxu0 0.0
  %205 = vmatpush2.msra.mxu0 %v80
  %206 = vmatprep.subr.mxu0 0.0
  %207 = vmatpush2.msra.mxu0 %v79
  %208 = vmatprep.subr.mxu0 0.0
  %209 = vmatpush2.msra.mxu0 %v78
  %210 = vmatprep.subr.mxu0 0.0
  %211 = vmatpush2.msra.mxu0 %v77
  %212 = vmatprep.subr.mxu0 0.0
  %213 = vmatpush2.msra.mxu0 %v76
  %214 = vmatprep.subr.mxu0 0.0
  %215 = vmatpush2.msra.mxu0 %v75
  %216 = vmatprep.subr.mxu0 0.0
  %217 = vmatpush2.msra.mxu0 %v74
  %218 = vmatprep.subr.mxu0 0.0
  %219 = vmatpush2.msra.mxu0 %v73
  %220 = vmatprep.subr.mxu0 0.0
  %221 = vmatpush2.msra.mxu0 %v72
  %222 = vmatprep.mubr.f32.mxu0 %v23
  %223 = vmatmul.mubr.f32.gmra.mxu0 %v22
  %v224 = vpop.f32.mrf.mxu0
  %v225 = vadd.f32 %v155, %v224
  %v226 = vpop.f32.mrf.mxu0
  %227 = vdwg.mxu0
  %v228 = vadd.f32 %v19, %v225
  %229 = vst [vmem:[#allocation2] sm:$0xff] %v228
  // Predicated region
  $region18: #{dual_graph_relation_forward.39} parent=0 // pred_check
    %p230 = pneg %p14
  $region19: #{dual_graph_relation_forward.39} parent=0 // pred_check_branch
    %232 = sbr.rel (%p230) target = $region21
  $region20: #{dual_graph_relation_forward.39} parent=0 // pred_region
    %v233 = vld [vmem:[#allocation2] sm:$0xff]
    %v234 = vld [vmem:[%s2] sm:$0x1]
    %v236 = vlaneseq
    %v237 = vshrl.u32 %v236, 7
    %v238 = vsub.s32 0, %v237
    %v239 = vrot.slane %v234, %v238
    %v241 = vadd.f32 %v233, %v239
    %242 = vst [vmem:[%s3] sm:$0xff] %v241
  $region21: #{dual_graph_relation_forward.39} parent=0 // pred_fallthru
    _
  // Predicated region
  $region22: #{dual_graph_relation_forward.39} parent=0 // pred_check
    _
  $region23: #{dual_graph_relation_forward.39} parent=0 // pred_check_branch
    %244 = sbr.rel (0) target = $region25
  $region24: #{dual_graph_relation_forward.39} parent=0 // pred_region
    _
  $region25: #{dual_graph_relation_forward.39} parent=0 // pred_fallthru
    _
  // Predicated region
  $region26: #{dual_graph_relation_forward.39} parent=0 // pred_check
    _
  $region27: #{dual_graph_relation_forward.39} parent=0 // pred_check_branch
    %246 = sbr.rel (0) target = $region29
  $region28: #{dual_graph_relation_forward.39} parent=0 // pred_region
    _
  $region29: #{dual_graph_relation_forward.39} parent=0 // pred_fallthru
    _

</llo_original>
